<compile_context>
chip_gen: v5e
topology: v5e:2x2
jax: 0.10.0
libtpu: 0.0.40
codegen_flags: <defaults>
</compile_context>

<pallas_src>
import functools

import jax
import jax.numpy as jnp
from jax.experimental import pallas as pl
from jax.experimental.pallas import tpu as pltpu


def encoder_block_kernel(
    x_ref,          # (rows, D)   f32 input tile, rows = block_b * N
    wqkv_ref,       # (D, 3D)     bf16
    bqkv_ref,       # (1, 3D)     f32
    wproj_ref,      # (D, D)      bf16
    bproj_ref,      # (1, D)      f32
    g1_ref,         # (1, D)      f32  LayerNorm1 gamma
    beta1_ref,      # (1, D)      f32  LayerNorm1 beta
    w1_ref,         # (D, F)      bf16
    b1_ref,         # (1, F)      f32
    w2_ref,         # (F, D)      bf16
    b2_ref,         # (1, D)      f32
    g2_ref,         # (1, D)      f32  LayerNorm2 gamma
    beta2_ref,      # (1, D)      f32  LayerNorm2 beta
    o_ref,          # (rows, D)
    qkv_sc,         # (rows, 3D)  bf16 scratch
    ctx_sc,         # (rows, D)   bf16 scratch (concatenated per-head contexts)
    *,
    n_heads: int,
    seq_len: int,
):
    rows, D = x_ref.shape
    N = seq_len
    Bt = rows // N
    dh = D // n_heads
    scale = float(dh) ** -0.5

    x_f32 = x_ref[...].astype(jnp.float32)       # residual path stays f32
    x_bf = x_ref[...].astype(jnp.bfloat16)       # matmul operand

    # ---- QKV projection for all Bt sequences at once (bf16 MXU, f32 acc). ----
    # Bias is added on the f32 accumulator, then cast to bf16 and stored directly
    # into scratch (no resident f32 qkv copy).
    qkv_sc[...] = (
        jnp.dot(x_bf, wqkv_ref[...], preferred_element_type=jnp.float32)
        + bqkv_ref[...]
    ).astype(jnp.bfloat16)

    # ---- multi-head attention: static loops over sequences and heads ---------
    # Per-head contexts go straight into ctx_sc at (row offset r0, column offset c0),
    # which (a) reproduces the head-concat layout for the projection and (b) bounds
    # live ranges of the unrolled loops (no big Python-list of intermediates).
    for b in range(Bt):                          # static, unrolled (small Bt)
        r0 = b * N
        for h in range(n_heads):                 # static, unrolled
            c0 = h * dh
            qh = qkv_sc[r0:r0 + N, c0:c0 + dh]                      # (N, dh) bf16
            kh = qkv_sc[r0:r0 + N, D + c0:D + c0 + dh]              # (N, dh) bf16
            vh = qkv_sc[r0:r0 + N, 2 * D + c0:2 * D + c0 + dh]      # (N, dh) bf16
            # s = q @ k^T without an explicit transpose (contract last dims).
            s = jax.lax.dot_general(
                qh, kh, (((1,), (1,)), ((), ())),
                preferred_element_type=jnp.float32) * scale          # (N, N) f32
            s = s - jnp.max(s, axis=-1, keepdims=True)
            p = jnp.exp(s)
            p = p * pl.reciprocal(jnp.sum(p, axis=-1, keepdims=True), approx=True)
            ctx = jnp.dot(p.astype(jnp.bfloat16), vh,
                          preferred_element_type=jnp.float32)        # (N, dh) f32
            ctx_sc[r0:r0 + N, c0:c0 + dh] = ctx.astype(jnp.bfloat16)

    # ---- single full-K output projection: (rows, D) @ (D, D) ------------------
    attn = jnp.dot(ctx_sc[...], wproj_ref[...],
                   preferred_element_type=jnp.float32) + bproj_ref[...]

    # ---- residual + LayerNorm1 (f32) ------------------------------------------
    h1 = attn + x_f32
    mu = jnp.mean(h1, axis=-1, keepdims=True)
    var = jnp.mean((h1 - mu) ** 2, axis=-1, keepdims=True)
    h1 = (h1 - mu) * jax.lax.rsqrt(var + 1e-5)
    h1 = h1 * g1_ref[...] + beta1_ref[...]

    # ---- FFN (MLP): bf16 matmuls, f32 epilogue ---------------------------------
    f = jnp.dot(h1.astype(jnp.bfloat16), w1_ref[...],
                preferred_element_type=jnp.float32) + b1_ref[...]
    # TODO(synk): torch nn.GELU default is exact erf GELU; tanh-approx used for robust Mosaic lowering.
    f = jax.nn.gelu(f, approximate=True)
    f = jnp.dot(f.astype(jnp.bfloat16), w2_ref[...],
                preferred_element_type=jnp.float32) + b2_ref[...]

    # ---- residual + LayerNorm2 (f32) -------------------------------------------
    y = f + h1
    mu2 = jnp.mean(y, axis=-1, keepdims=True)
    var2 = jnp.mean((y - mu2) ** 2, axis=-1, keepdims=True)
    y = (y - mu2) * jax.lax.rsqrt(var2 + 1e-5)
    y = y * g2_ref[...] + beta2_ref[...]

    o_ref[...] = y.astype(o_ref.dtype)


def _tpu_vmem_capacity_bytes():
    try:
        return int(pltpu.get_tpu_info().vmem_capacity_bytes)
    except Exception:
        return 64 * 1024 * 1024


def _target_rows():
    # Bigger tiles amortize per-step overhead on 128 MiB parts (v5e/v6e); keep tiles
    # modest on 64 MiB dual-TC v7x so resident weights + activations fit comfortably.
    cap = _tpu_vmem_capacity_bytes()
    return 512 if cap >= 100 * 1024 * 1024 else 256


def _pick_block_b(B, N, target_rows=None):
    """Largest legal divisor of B with block_b*N <= target_rows.

    Legality: (block_b * N) % 8 == 0 (sublane alignment) or block_b == B.
    Prefers an even (or single) number of grid steps so a dual-TC chip (v7x)
    shards the grid evenly.
    """
    if target_rows is None:
        target_rows = _target_rows()
    legal = [d for d in range(1, B + 1)
             if B % d == 0 and ((d * N) % 8 == 0 or d == B)]
    fitting = [d for d in legal if d * N <= target_rows]
    if fitting:
        even_steps = [d for d in fitting if (B // d) == 1 or (B // d) % 2 == 0]
        pool = even_steps or fitting
        return max(pool)
    return min(legal)


def _vmem_limit_bytes():
    """Explicit scoped-VMEM limit with headroom (default scoped limits are too small)."""
    return int(_tpu_vmem_capacity_bytes() * 3 // 4)


def transformer_encoder_block(x, params, *, n_heads, block_b=None):
    B, N, D = x.shape
    F_dim = params["w1"].shape[1]
    if block_b is None:
        block_b = _pick_block_b(B, N)
    assert B % block_b == 0, "block_b must divide batch"
    rows = block_b * N
    assert rows % 8 == 0 or block_b == B, "block rows must be sublane-aligned"
    grid = (B // block_b,)

    # Flatten (B, N, D) -> (B*N, D) on the host so each grid step gets a lane-dense
    # 2-D (rows, D) tile and the linear layers see a taller MXU M-dim.
    x2 = x.reshape(B * N, D)

    # bf16 weights: halves HBM->VMEM DMA & resident VMEM, and hits the bf16 MXU path.
    wqkv = params["wqkv"].astype(jnp.bfloat16)
    wproj = params["wproj"].astype(jnp.bfloat16)
    w1 = params["w1"].astype(jnp.bfloat16)
    w2 = params["w2"].astype(jnp.bfloat16)
    f32 = lambda a: a.astype(jnp.float32)

    def const_spec(shape):
        # Whole-array block, reused across the grid; Buffered(1) disables the dead
        # second (double-buffer) copy since the index_map is constant.
        return pl.BlockSpec(shape, lambda i: (0,) * len(shape),
                            pipeline_mode=pl.Buffered(1))

    kernel = functools.partial(encoder_block_kernel, n_heads=n_heads, seq_len=N)

    out2 = pl.pallas_call(
        kernel,
        out_shape=jax.ShapeDtypeStruct((B * N, D), x.dtype),
        grid=grid,
        in_specs=[
            pl.BlockSpec((rows, D), lambda i: (i, 0)),        # x (flattened)
            const_spec((D, 3 * D)),                           # wqkv (bf16)
            const_spec((1, 3 * D)),                           # bqkv
            const_spec((D, D)),                               # wproj (bf16)
            const_spec((1, D)),                               # bproj
            const_spec((1, D)),                               # ln1 gamma
            const_spec((1, D)),                               # ln1 beta
            const_spec((D, F_dim)),                           # w1 (bf16)
            const_spec((1, F_dim)),                           # b1
            const_spec((F_dim, D)),                           # w2 (bf16)
            const_spec((1, D)),                               # b2
            const_spec((1, D)),                               # ln2 gamma
            const_spec((1, D)),                               # ln2 beta
        ],
        out_specs=pl.BlockSpec((rows, D), lambda i: (i, 0)),
        scratch_shapes=[
            pltpu.VMEM((rows, 3 * D), jnp.bfloat16),          # qkv (bf16)
            pltpu.VMEM((rows, D), jnp.bfloat16),              # per-head contexts
        ],
        compiler_params=pltpu.CompilerParams(
            dimension_semantics=("parallel",),
            vmem_limit_bytes=_vmem_limit_bytes(),
        ),
    )(
        x2,
        wqkv, f32(params["bqkv"]),
        wproj, f32(params["bproj"]),
        f32(params["g1"]), f32(params["beta1"]),
        w1, f32(params["b1"]),
        w2, f32(params["b2"]),
        f32(params["g2"]), f32(params["beta2"]),
    )
    return out2.reshape(B, N, D)


def reference_block(x, params, *, n_heads):
    """Pure-JAX f32 reference of the same forward pass."""
    B, N, D = x.shape
    dh = D // n_heads
    qkv = x @ params["wqkv"] + params["bqkv"]                # (B, N, 3D)
    q, k, v = qkv[..., :D], qkv[..., D:2 * D], qkv[..., 2 * D:]
    q = q.reshape(B, N, n_heads, dh)
    k = k.reshape(B, N, n_heads, dh)
    v = v.reshape(B, N, n_heads, dh)
    s = jnp.einsum("bnhd,bmhd->bhnm", q, k) / jnp.sqrt(jnp.float32(dh))
    p = jax.nn.softmax(s, axis=-1)
    ctx = jnp.einsum("bhnm,bmhd->bnhd", p, v).reshape(B, N, D)
    attn = ctx @ params["wproj"] + params["bproj"]

    def ln(z, g, b):
        mu = jnp.mean(z, axis=-1, keepdims=True)
        var = jnp.mean((z - mu) ** 2, axis=-1, keepdims=True)
        return (z - mu) * jax.lax.rsqrt(var + 1e-5) * g + b

    h1 = ln(attn + x, params["g1"], params["beta1"])
    f = jax.nn.gelu(h1 @ params["w1"] + params["b1"], approximate=True)
    f = f @ params["w2"] + params["b2"]
    return ln(f + h1, params["g2"], params["beta2"])


def make_params(key, emb_dim, feat_dim):
    ks = jax.random.split(key, 4)
    D, F_dim = emb_dim, feat_dim
    s = 0.02
    return {
        "wqkv": s * jax.random.normal(ks[0], (D, 3 * D), jnp.float32),
        "bqkv": jnp.zeros((1, 3 * D), jnp.float32),
        "wproj": s * jax.random.normal(ks[1], (D, D), jnp.float32),
        "bproj": jnp.zeros((1, D), jnp.float32),
        "g1": jnp.ones((1, D), jnp.float32),
        "beta1": jnp.zeros((1, D), jnp.float32),
        "w1": s * jax.random.normal(ks[2], (D, F_dim), jnp.float32),
        "b1": jnp.zeros((1, F_dim), jnp.float32),
        "w2": s * jax.random.normal(ks[3], (F_dim, D), jnp.float32),
        "b2": jnp.zeros((1, D), jnp.float32),
        "g2": jnp.ones((1, D), jnp.float32),
        "beta2": jnp.zeros((1, D), jnp.float32),
    }


if __name__ == "__main__":
    # small shapes: batch=4, seq=8, emb_dim=32, heads=4, feat_dim=64
    B, N, D, H, F_dim = 4, 8, 32, 4, 64
    key = jax.random.PRNGKey(0)
    kx, kp = jax.random.split(key)
    x = jax.random.normal(kx, (B, N, D), jnp.float32)
    params = make_params(kp, D, F_dim)
    ref = reference_block(x, params, n_heads=H)

    # (1) auto tile selection (maximizes tile size -> typically a single grid step here)
    out_auto = jax.block_until_ready(transformer_encoder_block(x, params, n_heads=H))
    # (2) forced 2-step grid: exercises the index_map and reuse of the Buffered(1)
    #     resident weights across multiple grid iterations.
    out_grid = jax.block_until_ready(
        transformer_encoder_block(x, params, n_heads=H, block_b=2))

    assert out_auto.shape == (B, N, D)
    # bf16 matmul operands + approx reciprocal -> looser tolerance vs f32 reference.
    assert jnp.allclose(out_auto, ref, atol=1e-2, rtol=1e-2), "auto-tile mismatch vs JAX reference"
    assert jnp.allclose(out_grid, ref, atol=1e-2, rtol=1e-2), "2-step-grid mismatch vs JAX reference"

    print("KERNEL_OK")
</pallas_src>

<mosaic_0001>
module attributes {stable_mosaic.version = 11 : i64} {
  func.func @encoder_block_kernel(%arg0: i32, %arg1: memref<32x32xf32, #tpu.memory_space<vmem>>, %arg2: memref<32x96xbf16, #tpu.memory_space<vmem>>, %arg3: memref<1x96xf32, #tpu.memory_space<vmem>>, %arg4: memref<32x32xbf16, #tpu.memory_space<vmem>>, %arg5: memref<1x32xf32, #tpu.memory_space<vmem>>, %arg6: memref<1x32xf32, #tpu.memory_space<vmem>>, %arg7: memref<1x32xf32, #tpu.memory_space<vmem>>, %arg8: memref<32x64xbf16, #tpu.memory_space<vmem>>, %arg9: memref<1x64xf32, #tpu.memory_space<vmem>>, %arg10: memref<64x32xbf16, #tpu.memory_space<vmem>>, %arg11: memref<1x32xf32, #tpu.memory_space<vmem>>, %arg12: memref<1x32xf32, #tpu.memory_space<vmem>>, %arg13: memref<1x32xf32, #tpu.memory_space<vmem>>, %arg14: memref<32x32xf32, #tpu.memory_space<vmem>>, %arg15: memref<32x96xbf16, #tpu.memory_space<vmem>>, %arg16: memref<32x32xbf16, #tpu.memory_space<vmem>>) attributes {dimension_semantics = [#tpu.dimension_semantics<parallel>], iteration_bounds = array<i64: 1>, scalar_prefetch = 0 : i64, scratch_operands = 2 : i64, tpu.core_type = #tpu.core_type<tc>, window_params = [{transform_indices = @transform_0, window_bounds = array<i64: 32, 32>}, {pipeline_mode = #tpu.pipeline_mode<synchronous>, transform_indices = @transform_1, window_bounds = array<i64: 32, 96>}, {pipeline_mode = #tpu.pipeline_mode<synchronous>, transform_indices = @transform_2, window_bounds = array<i64: 1, 96>}, {pipeline_mode = #tpu.pipeline_mode<synchronous>, transform_indices = @transform_3, window_bounds = array<i64: 32, 32>}, {pipeline_mode = #tpu.pipeline_mode<synchronous>, transform_indices = @transform_4, window_bounds = array<i64: 1, 32>}, {pipeline_mode = #tpu.pipeline_mode<synchronous>, transform_indices = @transform_5, window_bounds = array<i64: 1, 32>}, {pipeline_mode = #tpu.pipeline_mode<synchronous>, transform_indices = @transform_6, window_bounds = array<i64: 1, 32>}, {pipeline_mode = #tpu.pipeline_mode<synchronous>, transform_indices = @transform_7, window_bounds = array<i64: 32, 64>}, {pipeline_mode = #tpu.pipeline_mode<synchronous>, transform_indices = @transform_8, window_bounds = array<i64: 1, 64>}, {pipeline_mode = #tpu.pipeline_mode<synchronous>, transform_indices = @transform_9, window_bounds = array<i64: 64, 32>}, {pipeline_mode = #tpu.pipeline_mode<synchronous>, transform_indices = @transform_10, window_bounds = array<i64: 1, 32>}, {pipeline_mode = #tpu.pipeline_mode<synchronous>, transform_indices = @transform_11, window_bounds = array<i64: 1, 32>}, {pipeline_mode = #tpu.pipeline_mode<synchronous>, transform_indices = @transform_12, window_bounds = array<i64: 1, 32>}, {transform_indices = @transform_13, window_bounds = array<i64: 32, 32>}]} {
    %c0 = arith.constant 0 : index
    %c0_0 = arith.constant 0 : index
    %0 = vector.load %arg1[%c0, %c0_0] : memref<32x32xf32, #tpu.memory_space<vmem>>, vector<32x32xf32>
    %c0_1 = arith.constant 0 : index
    %c0_2 = arith.constant 0 : index
    %1 = vector.load %arg1[%c0_1, %c0_2] : memref<32x32xf32, #tpu.memory_space<vmem>>, vector<32x32xf32>
    %2 = arith.truncf %1 : vector<32x32xf32> to vector<32x32xbf16>
    %c0_3 = arith.constant 0 : index
    %c0_4 = arith.constant 0 : index
    %3 = vector.load %arg2[%c0_3, %c0_4] : memref<32x96xbf16, #tpu.memory_space<vmem>>, vector<32x96xbf16>
    %cst = arith.constant dense<0.000000e+00> : vector<32x96xf32>
    %4 = tpu.matmul %2, %3, %cst {dimension_numbers = #tpu.dot_dimension_numbers<[1], [0], [0], [1], [0, 0, 1, 1], [], []>} : vector<32x32xbf16>, vector<32x96xbf16>, vector<32x96xf32> -> vector<32x96xf32>
    %c0_5 = arith.constant 0 : index
    %c0_6 = arith.constant 0 : index
    %5 = vector.load %arg3[%c0_5, %c0_6] : memref<1x96xf32, #tpu.memory_space<vmem>>, vector<1x96xf32>
    %6 = vector.broadcast %5 : vector<1x96xf32> to vector<32x96xf32>
    %7 = arith.addf %4, %6 : vector<32x96xf32>
    %8 = arith.truncf %7 : vector<32x96xf32> to vector<32x96xbf16>
    %c0_7 = arith.constant 0 : index
    %c0_8 = arith.constant 0 : index
    %9 = vector.load %arg15[%c0_7, %c0_8] : memref<32x96xbf16, #tpu.memory_space<vmem>>, vector<32x96xbf16>
    tpu.vector_store %arg15[%c0_7, %c0_8], %8 {strides = array<i32>} : memref<32x96xbf16, #tpu.memory_space<vmem>>, vector<32x96xbf16>,
    %c0_9 = arith.constant 0 : index
    %c0_10 = arith.constant 0 : index
    %10 = vector.load %arg15[%c0_9, %c0_10] : memref<32x96xbf16, #tpu.memory_space<vmem>>, vector<8x8xbf16>
    %c0_11 = arith.constant 0 : index
    %c32 = arith.constant 32 : index
    %11 = vector.load %arg15[%c0_11, %c32] : memref<32x96xbf16, #tpu.memory_space<vmem>>, vector<8x8xbf16>
    %c0_12 = arith.constant 0 : index
    %c64 = arith.constant 64 : index
    %12 = vector.load %arg15[%c0_12, %c64] : memref<32x96xbf16, #tpu.memory_space<vmem>>, vector<8x8xbf16>
    %cst_13 = arith.constant dense<0.000000e+00> : vector<8x8xf32>
    %13 = tpu.matmul %10, %11, %cst_13 {dimension_numbers = #tpu.dot_dimension_numbers<[1], [1], [0], [0], [0, 0, 1, 0], [], []>} : vector<8x8xbf16>, vector<8x8xbf16>, vector<8x8xf32> -> vector<8x8xf32>
    %cst_14 = arith.constant 0.353553385 : f32
    %14 = vector.broadcast %cst_14 : f32 to vector<8x8xf32>
    %15 = arith.mulf %13, %14 : vector<8x8xf32>
    %cst_15 = arith.constant dense<0xFF800000> : vector<8xf32>
    %16 = vector.multi_reduction <maximumf>, %15, %cst_15 [1] : vector<8x8xf32> to vector<8xf32>
    %17 = vector.shape_cast %16 : vector<8xf32> to vector<8x1xf32>
    %18 = vector.broadcast %17 : vector<8x1xf32> to vector<8x8xf32>
    %19 = arith.subf %15, %18 : vector<8x8xf32>
    %20 = math.exp %19 : vector<8x8xf32>
    %cst_16 = arith.constant dense<0.000000e+00> : vector<8xf32>
    %21 = vector.multi_reduction <add>, %20, %cst_16 [1] : vector<8x8xf32> to vector<8xf32>
    %22 = vector.shape_cast %21 : vector<8xf32> to vector<8x1xf32>
    %23 = tpu.reciprocal %22 {approx = true} : vector<8x1xf32> -> vector<8x1xf32>
    %24 = vector.broadcast %23 : vector<8x1xf32> to vector<8x8xf32>
    %25 = arith.mulf %20, %24 : vector<8x8xf32>
    %26 = arith.truncf %25 : vector<8x8xf32> to vector<8x8xbf16>
    %cst_17 = arith.constant dense<0.000000e+00> : vector<8x8xf32>
    %27 = tpu.matmul %26, %12, %cst_17 {dimension_numbers = #tpu.dot_dimension_numbers<[1], [0], [0], [1], [0, 0, 1, 1], [], []>} : vector<8x8xbf16>, vector<8x8xbf16>, vector<8x8xf32> -> vector<8x8xf32>
    %28 = arith.truncf %27 : vector<8x8xf32> to vector<8x8xbf16>
    %c0_18 = arith.constant 0 : index
    %c0_19 = arith.constant 0 : index
    %29 = vector.load %arg16[%c0_18, %c0_19] : memref<32x32xbf16, #tpu.memory_space<vmem>>, vector<8x8xbf16>
    tpu.vector_store %arg16[%c0_18, %c0_19], %28 {strides = array<i32>} : memref<32x32xbf16, #tpu.memory_space<vmem>>, vector<8x8xbf16>,
    %c0_20 = arith.constant 0 : index
    %c8 = arith.constant 8 : index
    %30 = vector.load %arg15[%c0_20, %c8] : memref<32x96xbf16, #tpu.memory_space<vmem>>, vector<8x8xbf16>
    %c0_21 = arith.constant 0 : index
    %c40 = arith.constant 40 : index
    %31 = vector.load %arg15[%c0_21, %c40] : memref<32x96xbf16, #tpu.memory_space<vmem>>, vector<8x8xbf16>
    %c0_22 = arith.constant 0 : index
    %c72 = arith.constant 72 : index
    %32 = vector.load %arg15[%c0_22, %c72] : memref<32x96xbf16, #tpu.memory_space<vmem>>, vector<8x8xbf16>
    %cst_23 = arith.constant dense<0.000000e+00> : vector<8x8xf32>
    %33 = tpu.matmul %30, %31, %cst_23 {dimension_numbers = #tpu.dot_dimension_numbers<[1], [1], [0], [0], [0, 0, 1, 0], [], []>} : vector<8x8xbf16>, vector<8x8xbf16>, vector<8x8xf32> -> vector<8x8xf32>
    %cst_24 = arith.constant 0.353553385 : f32
    %34 = vector.broadcast %cst_24 : f32 to vector<8x8xf32>
    %35 = arith.mulf %33, %34 : vector<8x8xf32>
    %cst_25 = arith.constant dense<0xFF800000> : vector<8xf32>
    %36 = vector.multi_reduction <maximumf>, %35, %cst_25 [1] : vector<8x8xf32> to vector<8xf32>
    %37 = vector.shape_cast %36 : vector<8xf32> to vector<8x1xf32>
    %38 = vector.broadcast %37 : vector<8x1xf32> to vector<8x8xf32>
    %39 = arith.subf %35, %38 : vector<8x8xf32>
    %40 = math.exp %39 : vector<8x8xf32>
    %cst_26 = arith.constant dense<0.000000e+00> : vector<8xf32>
    %41 = vector.multi_reduction <add>, %40, %cst_26 [1] : vector<8x8xf32> to vector<8xf32>
    %42 = vector.shape_cast %41 : vector<8xf32> to vector<8x1xf32>
    %43 = tpu.reciprocal %42 {approx = true} : vector<8x1xf32> -> vector<8x1xf32>
    %44 = vector.broadcast %43 : vector<8x1xf32> to vector<8x8xf32>
    %45 = arith.mulf %40, %44 : vector<8x8xf32>
    %46 = arith.truncf %45 : vector<8x8xf32> to vector<8x8xbf16>
    %cst_27 = arith.constant dense<0.000000e+00> : vector<8x8xf32>
    %47 = tpu.matmul %46, %32, %cst_27 {dimension_numbers = #tpu.dot_dimension_numbers<[1], [0], [0], [1], [0, 0, 1, 1], [], []>} : vector<8x8xbf16>, vector<8x8xbf16>, vector<8x8xf32> -> vector<8x8xf32>
    %48 = arith.truncf %47 : vector<8x8xf32> to vector<8x8xbf16>
    %c0_28 = arith.constant 0 : index
    %c8_29 = arith.constant 8 : index
    %49 = vector.load %arg16[%c0_28, %c8_29] : memref<32x32xbf16, #tpu.memory_space<vmem>>, vector<8x8xbf16>
    tpu.vector_store %arg16[%c0_28, %c8_29], %48 {strides = array<i32>} : memref<32x32xbf16, #tpu.memory_space<vmem>>, vector<8x8xbf16>,
    %c0_30 = arith.constant 0 : index
    %c16 = arith.constant 16 : index
    %50 = vector.load %arg15[%c0_30, %c16] : memref<32x96xbf16, #tpu.memory_space<vmem>>, vector<8x8xbf16>
    %c0_31 = arith.constant 0 : index
    %c48 = arith.constant 48 : index
    %51 = vector.load %arg15[%c0_31, %c48] : memref<32x96xbf16, #tpu.memory_space<vmem>>, vector<8x8xbf16>
    %c0_32 = arith.constant 0 : index
    %c80 = arith.constant 80 : index
    %52 = vector.load %arg15[%c0_32, %c80] : memref<32x96xbf16, #tpu.memory_space<vmem>>, vector<8x8xbf16>
    %cst_33 = arith.constant dense<0.000000e+00> : vector<8x8xf32>
    %53 = tpu.matmul %50, %51, %cst_33 {dimension_numbers = #tpu.dot_dimension_numbers<[1], [1], [0], [0], [0, 0, 1, 0], [], []>} : vector<8x8xbf16>, vector<8x8xbf16>, vector<8x8xf32> -> vector<8x8xf32>
    %cst_34 = arith.constant 0.353553385 : f32
    %54 = vector.broadcast %cst_34 : f32 to vector<8x8xf32>
    %55 = arith.mulf %53, %54 : vector<8x8xf32>
    %cst_35 = arith.constant dense<0xFF800000> : vector<8xf32>
    %56 = vector.multi_reduction <maximumf>, %55, %cst_35 [1] : vector<8x8xf32> to vector<8xf32>
    %57 = vector.shape_cast %56 : vector<8xf32> to vector<8x1xf32>
    %58 = vector.broadcast %57 : vector<8x1xf32> to vector<8x8xf32>
    %59 = arith.subf %55, %58 : vector<8x8xf32>
    %60 = math.exp %59 : vector<8x8xf32>
    %cst_36 = arith.constant dense<0.000000e+00> : vector<8xf32>
    %61 = vector.multi_reduction <add>, %60, %cst_36 [1] : vector<8x8xf32> to vector<8xf32>
    %62 = vector.shape_cast %61 : vector<8xf32> to vector<8x1xf32>
    %63 = tpu.reciprocal %62 {approx = true} : vector<8x1xf32> -> vector<8x1xf32>
    %64 = vector.broadcast %63 : vector<8x1xf32> to vector<8x8xf32>
    %65 = arith.mulf %60, %64 : vector<8x8xf32>
    %66 = arith.truncf %65 : vector<8x8xf32> to vector<8x8xbf16>
    %cst_37 = arith.constant dense<0.000000e+00> : vector<8x8xf32>
    %67 = tpu.matmul %66, %52, %cst_37 {dimension_numbers = #tpu.dot_dimension_numbers<[1], [0], [0], [1], [0, 0, 1, 1], [], []>} : vector<8x8xbf16>, vector<8x8xbf16>, vector<8x8xf32> -> vector<8x8xf32>
    %68 = arith.truncf %67 : vector<8x8xf32> to vector<8x8xbf16>
    %c0_38 = arith.constant 0 : index
    %c16_39 = arith.constant 16 : index
    %69 = vector.load %arg16[%c0_38, %c16_39] : memref<32x32xbf16, #tpu.memory_space<vmem>>, vector<8x8xbf16>
    tpu.vector_store %arg16[%c0_38, %c16_39], %68 {strides = array<i32>} : memref<32x32xbf16, #tpu.memory_space<vmem>>, vector<8x8xbf16>,
    %c0_40 = arith.constant 0 : index
    %c24 = arith.constant 24 : index
    %70 = vector.load %arg15[%c0_40, %c24] : memref<32x96xbf16, #tpu.memory_space<vmem>>, vector<8x8xbf16>
    %c0_41 = arith.constant 0 : index
    %c56 = arith.constant 56 : index
    %71 = vector.load %arg15[%c0_41, %c56] : memref<32x96xbf16, #tpu.memory_space<vmem>>, vector<8x8xbf16>
    %c0_42 = arith.constant 0 : index
    %c88 = arith.constant 88 : index
    %72 = vector.load %arg15[%c0_42, %c88] : memref<32x96xbf16, #tpu.memory_space<vmem>>, vector<8x8xbf16>
    %cst_43 = arith.constant dense<0.000000e+00> : vector<8x8xf32>
    %73 = tpu.matmul %70, %71, %cst_43 {dimension_numbers = #tpu.dot_dimension_numbers<[1], [1], [0], [0], [0, 0, 1, 0], [], []>} : vector<8x8xbf16>, vector<8x8xbf16>, vector<8x8xf32> -> vector<8x8xf32>
    %cst_44 = arith.constant 0.353553385 : f32
    %74 = vector.broadcast %cst_44 : f32 to vector<8x8xf32>
    %75 = arith.mulf %73, %74 : vector<8x8xf32>
    %cst_45 = arith.constant dense<0xFF800000> : vector<8xf32>
    %76 = vector.multi_reduction <maximumf>, %75, %cst_45 [1] : vector<8x8xf32> to vector<8xf32>
    %77 = vector.shape_cast %76 : vector<8xf32> to vector<8x1xf32>
    %78 = vector.broadcast %77 : vector<8x1xf32> to vector<8x8xf32>
    %79 = arith.subf %75, %78 : vector<8x8xf32>
    %80 = math.exp %79 : vector<8x8xf32>
    %cst_46 = arith.constant dense<0.000000e+00> : vector<8xf32>
    %81 = vector.multi_reduction <add>, %80, %cst_46 [1] : vector<8x8xf32> to vector<8xf32>
    %82 = vector.shape_cast %81 : vector<8xf32> to vector<8x1xf32>
    %83 = tpu.reciprocal %82 {approx = true} : vector<8x1xf32> -> vector<8x1xf32>
    %84 = vector.broadcast %83 : vector<8x1xf32> to vector<8x8xf32>
    %85 = arith.mulf %80, %84 : vector<8x8xf32>
    %86 = arith.truncf %85 : vector<8x8xf32> to vector<8x8xbf16>
    %cst_47 = arith.constant dense<0.000000e+00> : vector<8x8xf32>
    %87 = tpu.matmul %86, %72, %cst_47 {dimension_numbers = #tpu.dot_dimension_numbers<[1], [0], [0], [1], [0, 0, 1, 1], [], []>} : vector<8x8xbf16>, vector<8x8xbf16>, vector<8x8xf32> -> vector<8x8xf32>
    %88 = arith.truncf %87 : vector<8x8xf32> to vector<8x8xbf16>
    %c0_48 = arith.constant 0 : index
    %c24_49 = arith.constant 24 : index
    %89 = vector.load %arg16[%c0_48, %c24_49] : memref<32x32xbf16, #tpu.memory_space<vmem>>, vector<8x8xbf16>
    tpu.vector_store %arg16[%c0_48, %c24_49], %88 {strides = array<i32>} : memref<32x32xbf16, #tpu.memory_space<vmem>>, vector<8x8xbf16>,
    %c8_50 = arith.constant 8 : index
    %c0_51 = arith.constant 0 : index
    %90 = vector.load %arg15[%c8_50, %c0_51] : memref<32x96xbf16, #tpu.memory_space<vmem>>, vector<8x8xbf16>
    %c8_52 = arith.constant 8 : index
    %c32_53 = arith.constant 32 : index
    %91 = vector.load %arg15[%c8_52, %c32_53] : memref<32x96xbf16, #tpu.memory_space<vmem>>, vector<8x8xbf16>
    %c8_54 = arith.constant 8 : index
    %c64_55 = arith.constant 64 : index
    %92 = vector.load %arg15[%c8_54, %c64_55] : memref<32x96xbf16, #tpu.memory_space<vmem>>, vector<8x8xbf16>
    %cst_56 = arith.constant dense<0.000000e+00> : vector<8x8xf32>
    %93 = tpu.matmul %90, %91, %cst_56 {dimension_numbers = #tpu.dot_dimension_numbers<[1], [1], [0], [0], [0, 0, 1, 0], [], []>} : vector<8x8xbf16>, vector<8x8xbf16>, vector<8x8xf32> -> vector<8x8xf32>
    %cst_57 = arith.constant 0.353553385 : f32
    %94 = vector.broadcast %cst_57 : f32 to vector<8x8xf32>
    %95 = arith.mulf %93, %94 : vector<8x8xf32>
    %cst_58 = arith.constant dense<0xFF800000> : vector<8xf32>
    %96 = vector.multi_reduction <maximumf>, %95, %cst_58 [1] : vector<8x8xf32> to vector<8xf32>
    %97 = vector.shape_cast %96 : vector<8xf32> to vector<8x1xf32>
    %98 = vector.broadcast %97 : vector<8x1xf32> to vector<8x8xf32>
    %99 = arith.subf %95, %98 : vector<8x8xf32>
    %100 = math.exp %99 : vector<8x8xf32>
    %cst_59 = arith.constant dense<0.000000e+00> : vector<8xf32>
    %101 = vector.multi_reduction <add>, %100, %cst_59 [1] : vector<8x8xf32> to vector<8xf32>
    %102 = vector.shape_cast %101 : vector<8xf32> to vector<8x1xf32>
    %103 = tpu.reciprocal %102 {approx = true} : vector<8x1xf32> -> vector<8x1xf32>
    %104 = vector.broadcast %103 : vector<8x1xf32> to vector<8x8xf32>
    %105 = arith.mulf %100, %104 : vector<8x8xf32>
    %106 = arith.truncf %105 : vector<8x8xf32> to vector<8x8xbf16>
    %cst_60 = arith.constant dense<0.000000e+00> : vector<8x8xf32>
    %107 = tpu.matmul %106, %92, %cst_60 {dimension_numbers = #tpu.dot_dimension_numbers<[1], [0], [0], [1], [0, 0, 1, 1], [], []>} : vector<8x8xbf16>, vector<8x8xbf16>, vector<8x8xf32> -> vector<8x8xf32>
    %108 = arith.truncf %107 : vector<8x8xf32> to vector<8x8xbf16>
    %c8_61 = arith.constant 8 : index
    %c0_62 = arith.constant 0 : index
    %109 = vector.load %arg16[%c8_61, %c0_62] : memref<32x32xbf16, #tpu.memory_space<vmem>>, vector<8x8xbf16>
    tpu.vector_store %arg16[%c8_61, %c0_62], %108 {strides = array<i32>} : memref<32x32xbf16, #tpu.memory_space<vmem>>, vector<8x8xbf16>,
    %c8_63 = arith.constant 8 : index
    %c8_64 = arith.constant 8 : index
    %110 = vector.load %arg15[%c8_63, %c8_64] : memref<32x96xbf16, #tpu.memory_space<vmem>>, vector<8x8xbf16>
    %c8_65 = arith.constant 8 : index
    %c40_66 = arith.constant 40 : index
    %111 = vector.load %arg15[%c8_65, %c40_66] : memref<32x96xbf16, #tpu.memory_space<vmem>>, vector<8x8xbf16>
    %c8_67 = arith.constant 8 : index
    %c72_68 = arith.constant 72 : index
    %112 = vector.load %arg15[%c8_67, %c72_68] : memref<32x96xbf16, #tpu.memory_space<vmem>>, vector<8x8xbf16>
    %cst_69 = arith.constant dense<0.000000e+00> : vector<8x8xf32>
    %113 = tpu.matmul %110, %111, %cst_69 {dimension_numbers = #tpu.dot_dimension_numbers<[1], [1], [0], [0], [0, 0, 1, 0], [], []>} : vector<8x8xbf16>, vector<8x8xbf16>, vector<8x8xf32> -> vector<8x8xf32>
    %cst_70 = arith.constant 0.353553385 : f32
    %114 = vector.broadcast %cst_70 : f32 to vector<8x8xf32>
    %115 = arith.mulf %113, %114 : vector<8x8xf32>
    %cst_71 = arith.constant dense<0xFF800000> : vector<8xf32>
    %116 = vector.multi_reduction <maximumf>, %115, %cst_71 [1] : vector<8x8xf32> to vector<8xf32>
    %117 = vector.shape_cast %116 : vector<8xf32> to vector<8x1xf32>
    %118 = vector.broadcast %117 : vector<8x1xf32> to vector<8x8xf32>
    %119 = arith.subf %115, %118 : vector<8x8xf32>
    %120 = math.exp %119 : vector<8x8xf32>
    %cst_72 = arith.constant dense<0.000000e+00> : vector<8xf32>
    %121 = vector.multi_reduction <add>, %120, %cst_72 [1] : vector<8x8xf32> to vector<8xf32>
    %122 = vector.shape_cast %121 : vector<8xf32> to vector<8x1xf32>
    %123 = tpu.reciprocal %122 {approx = true} : vector<8x1xf32> -> vector<8x1xf32>
    %124 = vector.broadcast %123 : vector<8x1xf32> to vector<8x8xf32>
    %125 = arith.mulf %120, %124 : vector<8x8xf32>
    %126 = arith.truncf %125 : vector<8x8xf32> to vector<8x8xbf16>
    %cst_73 = arith.constant dense<0.000000e+00> : vector<8x8xf32>
    %127 = tpu.matmul %126, %112, %cst_73 {dimension_numbers = #tpu.dot_dimension_numbers<[1], [0], [0], [1], [0, 0, 1, 1], [], []>} : vector<8x8xbf16>, vector<8x8xbf16>, vector<8x8xf32> -> vector<8x8xf32>
    %128 = arith.truncf %127 : vector<8x8xf32> to vector<8x8xbf16>
    %c8_74 = arith.constant 8 : index
    %c8_75 = arith.constant 8 : index
    %129 = vector.load %arg16[%c8_74, %c8_75] : memref<32x32xbf16, #tpu.memory_space<vmem>>, vector<8x8xbf16>
    tpu.vector_store %arg16[%c8_74, %c8_75], %128 {strides = array<i32>} : memref<32x32xbf16, #tpu.memory_space<vmem>>, vector<8x8xbf16>,
    %c8_76 = arith.constant 8 : index
    %c16_77 = arith.constant 16 : index
    %130 = vector.load %arg15[%c8_76, %c16_77] : memref<32x96xbf16, #tpu.memory_space<vmem>>, vector<8x8xbf16>
    %c8_78 = arith.constant 8 : index
    %c48_79 = arith.constant 48 : index
    %131 = vector.load %arg15[%c8_78, %c48_79] : memref<32x96xbf16, #tpu.memory_space<vmem>>, vector<8x8xbf16>
    %c8_80 = arith.constant 8 : index
    %c80_81 = arith.constant 80 : index
    %132 = vector.load %arg15[%c8_80, %c80_81] : memref<32x96xbf16, #tpu.memory_space<vmem>>, vector<8x8xbf16>
    %cst_82 = arith.constant dense<0.000000e+00> : vector<8x8xf32>
    %133 = tpu.matmul %130, %131, %cst_82 {dimension_numbers = #tpu.dot_dimension_numbers<[1], [1], [0], [0], [0, 0, 1, 0], [], []>} : vector<8x8xbf16>, vector<8x8xbf16>, vector<8x8xf32> -> vector<8x8xf32>
    %cst_83 = arith.constant 0.353553385 : f32
    %134 = vector.broadcast %cst_83 : f32 to vector<8x8xf32>
    %135 = arith.mulf %133, %134 : vector<8x8xf32>
    %cst_84 = arith.constant dense<0xFF800000> : vector<8xf32>
    %136 = vector.multi_reduction <maximumf>, %135, %cst_84 [1] : vector<8x8xf32> to vector<8xf32>
    %137 = vector.shape_cast %136 : vector<8xf32> to vector<8x1xf32>
    %138 = vector.broadcast %137 : vector<8x1xf32> to vector<8x8xf32>
    %139 = arith.subf %135, %138 : vector<8x8xf32>
    %140 = math.exp %139 : vector<8x8xf32>
    %cst_85 = arith.constant dense<0.000000e+00> : vector<8xf32>
    %141 = vector.multi_reduction <add>, %140, %cst_85 [1] : vector<8x8xf32> to vector<8xf32>
    %142 = vector.shape_cast %141 : vector<8xf32> to vector<8x1xf32>
    %143 = tpu.reciprocal %142 {approx = true} : vector<8x1xf32> -> vector<8x1xf32>
    %144 = vector.broadcast %143 : vector<8x1xf32> to vector<8x8xf32>
    %145 = arith.mulf %140, %144 : vector<8x8xf32>
    %146 = arith.truncf %145 : vector<8x8xf32> to vector<8x8xbf16>
    %cst_86 = arith.constant dense<0.000000e+00> : vector<8x8xf32>
    %147 = tpu.matmul %146, %132, %cst_86 {dimension_numbers = #tpu.dot_dimension_numbers<[1], [0], [0], [1], [0, 0, 1, 1], [], []>} : vector<8x8xbf16>, vector<8x8xbf16>, vector<8x8xf32> -> vector<8x8xf32>
    %148 = arith.truncf %147 : vector<8x8xf32> to vector<8x8xbf16>
    %c8_87 = arith.constant 8 : index
    %c16_88 = arith.constant 16 : index
    %149 = vector.load %arg16[%c8_87, %c16_88] : memref<32x32xbf16, #tpu.memory_space<vmem>>, vector<8x8xbf16>
    tpu.vector_store %arg16[%c8_87, %c16_88], %148 {strides = array<i32>} : memref<32x32xbf16, #tpu.memory_space<vmem>>, vector<8x8xbf16>,
    %c8_89 = arith.constant 8 : index
    %c24_90 = arith.constant 24 : index
    %150 = vector.load %arg15[%c8_89, %c24_90] : memref<32x96xbf16, #tpu.memory_space<vmem>>, vector<8x8xbf16>
    %c8_91 = arith.constant 8 : index
    %c56_92 = arith.constant 56 : index
    %151 = vector.load %arg15[%c8_91, %c56_92] : memref<32x96xbf16, #tpu.memory_space<vmem>>, vector<8x8xbf16>
    %c8_93 = arith.constant 8 : index
    %c88_94 = arith.constant 88 : index
    %152 = vector.load %arg15[%c8_93, %c88_94] : memref<32x96xbf16, #tpu.memory_space<vmem>>, vector<8x8xbf16>
    %cst_95 = arith.constant dense<0.000000e+00> : vector<8x8xf32>
    %153 = tpu.matmul %150, %151, %cst_95 {dimension_numbers = #tpu.dot_dimension_numbers<[1], [1], [0], [0], [0, 0, 1, 0], [], []>} : vector<8x8xbf16>, vector<8x8xbf16>, vector<8x8xf32> -> vector<8x8xf32>
    %cst_96 = arith.constant 0.353553385 : f32
    %154 = vector.broadcast %cst_96 : f32 to vector<8x8xf32>
    %155 = arith.mulf %153, %154 : vector<8x8xf32>
    %cst_97 = arith.constant dense<0xFF800000> : vector<8xf32>
    %156 = vector.multi_reduction <maximumf>, %155, %cst_97 [1] : vector<8x8xf32> to vector<8xf32>
    %157 = vector.shape_cast %156 : vector<8xf32> to vector<8x1xf32>
    %158 = vector.broadcast %157 : vector<8x1xf32> to vector<8x8xf32>
    %159 = arith.subf %155, %158 : vector<8x8xf32>
    %160 = math.exp %159 : vector<8x8xf32>
    %cst_98 = arith.constant dense<0.000000e+00> : vector<8xf32>
    %161 = vector.multi_reduction <add>, %160, %cst_98 [1] : vector<8x8xf32> to vector<8xf32>
    %162 = vector.shape_cast %161 : vector<8xf32> to vector<8x1xf32>
    %163 = tpu.reciprocal %162 {approx = true} : vector<8x1xf32> -> vector<8x1xf32>
    %164 = vector.broadcast %163 : vector<8x1xf32> to vector<8x8xf32>
    %165 = arith.mulf %160, %164 : vector<8x8xf32>
    %166 = arith.truncf %165 : vector<8x8xf32> to vector<8x8xbf16>
    %cst_99 = arith.constant dense<0.000000e+00> : vector<8x8xf32>
    %167 = tpu.matmul %166, %152, %cst_99 {dimension_numbers = #tpu.dot_dimension_numbers<[1], [0], [0], [1], [0, 0, 1, 1], [], []>} : vector<8x8xbf16>, vector<8x8xbf16>, vector<8x8xf32> -> vector<8x8xf32>
    %168 = arith.truncf %167 : vector<8x8xf32> to vector<8x8xbf16>
    %c8_100 = arith.constant 8 : index
    %c24_101 = arith.constant 24 : index
    %169 = vector.load %arg16[%c8_100, %c24_101] : memref<32x32xbf16, #tpu.memory_space<vmem>>, vector<8x8xbf16>
    tpu.vector_store %arg16[%c8_100, %c24_101], %168 {strides = array<i32>} : memref<32x32xbf16, #tpu.memory_space<vmem>>, vector<8x8xbf16>,
    %c16_102 = arith.constant 16 : index
    %c0_103 = arith.constant 0 : index
    %170 = vector.load %arg15[%c16_102, %c0_103] : memref<32x96xbf16, #tpu.memory_space<vmem>>, vector<8x8xbf16>
    %c16_104 = arith.constant 16 : index
    %c32_105 = arith.constant 32 : index
    %171 = vector.load %arg15[%c16_104, %c32_105] : memref<32x96xbf16, #tpu.memory_space<vmem>>, vector<8x8xbf16>
    %c16_106 = arith.constant 16 : index
    %c64_107 = arith.constant 64 : index
    %172 = vector.load %arg15[%c16_106, %c64_107] : memref<32x96xbf16, #tpu.memory_space<vmem>>, vector<8x8xbf16>
    %cst_108 = arith.constant dense<0.000000e+00> : vector<8x8xf32>
    %173 = tpu.matmul %170, %171, %cst_108 {dimension_numbers = #tpu.dot_dimension_numbers<[1], [1], [0], [0], [0, 0, 1, 0], [], []>} : vector<8x8xbf16>, vector<8x8xbf16>, vector<8x8xf32> -> vector<8x8xf32>
    %cst_109 = arith.constant 0.353553385 : f32
    %174 = vector.broadcast %cst_109 : f32 to vector<8x8xf32>
    %175 = arith.mulf %173, %174 : vector<8x8xf32>
    %cst_110 = arith.constant dense<0xFF800000> : vector<8xf32>
    %176 = vector.multi_reduction <maximumf>, %175, %cst_110 [1] : vector<8x8xf32> to vector<8xf32>
    %177 = vector.shape_cast %176 : vector<8xf32> to vector<8x1xf32>
    %178 = vector.broadcast %177 : vector<8x1xf32> to vector<8x8xf32>
    %179 = arith.subf %175, %178 : vector<8x8xf32>
    %180 = math.exp %179 : vector<8x8xf32>
    %cst_111 = arith.constant dense<0.000000e+00> : vector<8xf32>
    %181 = vector.multi_reduction <add>, %180, %cst_111 [1] : vector<8x8xf32> to vector<8xf32>
    %182 = vector.shape_cast %181 : vector<8xf32> to vector<8x1xf32>
    %183 = tpu.reciprocal %182 {approx = true} : vector<8x1xf32> -> vector<8x1xf32>
    %184 = vector.broadcast %183 : vector<8x1xf32> to vector<8x8xf32>
    %185 = arith.mulf %180, %184 : vector<8x8xf32>
    %186 = arith.truncf %185 : vector<8x8xf32> to vector<8x8xbf16>
    %cst_112 = arith.constant dense<0.000000e+00> : vector<8x8xf32>
    %187 = tpu.matmul %186, %172, %cst_112 {dimension_numbers = #tpu.dot_dimension_numbers<[1], [0], [0], [1], [0, 0, 1, 1], [], []>} : vector<8x8xbf16>, vector<8x8xbf16>, vector<8x8xf32> -> vector<8x8xf32>
    %188 = arith.truncf %187 : vector<8x8xf32> to vector<8x8xbf16>
    %c16_113 = arith.constant 16 : index
    %c0_114 = arith.constant 0 : index
    %189 = vector.load %arg16[%c16_113, %c0_114] : memref<32x32xbf16, #tpu.memory_space<vmem>>, vector<8x8xbf16>
    tpu.vector_store %arg16[%c16_113, %c0_114], %188 {strides = array<i32>} : memref<32x32xbf16, #tpu.memory_space<vmem>>, vector<8x8xbf16>,
    %c16_115 = arith.constant 16 : index
    %c8_116 = arith.constant 8 : index
    %190 = vector.load %arg15[%c16_115, %c8_116] : memref<32x96xbf16, #tpu.memory_space<vmem>>, vector<8x8xbf16>
    %c16_117 = arith.constant 16 : index
    %c40_118 = arith.constant 40 : index
    %191 = vector.load %arg15[%c16_117, %c40_118] : memref<32x96xbf16, #tpu.memory_space<vmem>>, vector<8x8xbf16>
    %c16_119 = arith.constant 16 : index
    %c72_120 = arith.constant 72 : index
    %192 = vector.load %arg15[%c16_119, %c72_120] : memref<32x96xbf16, #tpu.memory_space<vmem>>, vector<8x8xbf16>
    %cst_121 = arith.constant dense<0.000000e+00> : vector<8x8xf32>
    %193 = tpu.matmul %190, %191, %cst_121 {dimension_numbers = #tpu.dot_dimension_numbers<[1], [1], [0], [0], [0, 0, 1, 0], [], []>} : vector<8x8xbf16>, vector<8x8xbf16>, vector<8x8xf32> -> vector<8x8xf32>
    %cst_122 = arith.constant 0.353553385 : f32
    %194 = vector.broadcast %cst_122 : f32 to vector<8x8xf32>
    %195 = arith.mulf %193, %194 : vector<8x8xf32>
    %cst_123 = arith.constant dense<0xFF800000> : vector<8xf32>
    %196 = vector.multi_reduction <maximumf>, %195, %cst_123 [1] : vector<8x8xf32> to vector<8xf32>
    %197 = vector.shape_cast %196 : vector<8xf32> to vector<8x1xf32>
    %198 = vector.broadcast %197 : vector<8x1xf32> to vector<8x8xf32>
    %199 = arith.subf %195, %198 : vector<8x8xf32>
    %200 = math.exp %199 : vector<8x8xf32>
    %cst_124 = arith.constant dense<0.000000e+00> : vector<8xf32>
    %201 = vector.multi_reduction <add>, %200, %cst_124 [1] : vector<8x8xf32> to vector<8xf32>
    %202 = vector.shape_cast %201 : vector<8xf32> to vector<8x1xf32>
    %203 = tpu.reciprocal %202 {approx = true} : vector<8x1xf32> -> vector<8x1xf32>
    %204 = vector.broadcast %203 : vector<8x1xf32> to vector<8x8xf32>
    %205 = arith.mulf %200, %204 : vector<8x8xf32>
    %206 = arith.truncf %205 : vector<8x8xf32> to vector<8x8xbf16>
    %cst_125 = arith.constant dense<0.000000e+00> : vector<8x8xf32>
    %207 = tpu.matmul %206, %192, %cst_125 {dimension_numbers = #tpu.dot_dimension_numbers<[1], [0], [0], [1], [0, 0, 1, 1], [], []>} : vector<8x8xbf16>, vector<8x8xbf16>, vector<8x8xf32> -> vector<8x8xf32>
    %208 = arith.truncf %207 : vector<8x8xf32> to vector<8x8xbf16>
    %c16_126 = arith.constant 16 : index
    %c8_127 = arith.constant 8 : index
    %209 = vector.load %arg16[%c16_126, %c8_127] : memref<32x32xbf16, #tpu.memory_space<vmem>>, vector<8x8xbf16>
    tpu.vector_store %arg16[%c16_126, %c8_127], %208 {strides = array<i32>} : memref<32x32xbf16, #tpu.memory_space<vmem>>, vector<8x8xbf16>,
    %c16_128 = arith.constant 16 : index
    %c16_129 = arith.constant 16 : index
    %210 = vector.load %arg15[%c16_128, %c16_129] : memref<32x96xbf16, #tpu.memory_space<vmem>>, vector<8x8xbf16>
    %c16_130 = arith.constant 16 : index
    %c48_131 = arith.constant 48 : index
    %211 = vector.load %arg15[%c16_130, %c48_131] : memref<32x96xbf16, #tpu.memory_space<vmem>>, vector<8x8xbf16>
    %c16_132 = arith.constant 16 : index
    %c80_133 = arith.constant 80 : index
    %212 = vector.load %arg15[%c16_132, %c80_133] : memref<32x96xbf16, #tpu.memory_space<vmem>>, vector<8x8xbf16>
    %cst_134 = arith.constant dense<0.000000e+00> : vector<8x8xf32>
    %213 = tpu.matmul %210, %211, %cst_134 {dimension_numbers = #tpu.dot_dimension_numbers<[1], [1], [0], [0], [0, 0, 1, 0], [], []>} : vector<8x8xbf16>, vector<8x8xbf16>, vector<8x8xf32> -> vector<8x8xf32>
    %cst_135 = arith.constant 0.353553385 : f32
    %214 = vector.broadcast %cst_135 : f32 to vector<8x8xf32>
    %215 = arith.mulf %213, %214 : vector<8x8xf32>
    %cst_136 = arith.constant dense<0xFF800000> : vector<8xf32>
    %216 = vector.multi_reduction <maximumf>, %215, %cst_136 [1] : vector<8x8xf32> to vector<8xf32>
    %217 = vector.shape_cast %216 : vector<8xf32> to vector<8x1xf32>
    %218 = vector.broadcast %217 : vector<8x1xf32> to vector<8x8xf32>
    %219 = arith.subf %215, %218 : vector<8x8xf32>
    %220 = math.exp %219 : vector<8x8xf32>
    %cst_137 = arith.constant dense<0.000000e+00> : vector<8xf32>
    %221 = vector.multi_reduction <add>, %220, %cst_137 [1] : vector<8x8xf32> to vector<8xf32>
    %222 = vector.shape_cast %221 : vector<8xf32> to vector<8x1xf32>
    %223 = tpu.reciprocal %222 {approx = true} : vector<8x1xf32> -> vector<8x1xf32>
    %224 = vector.broadcast %223 : vector<8x1xf32> to vector<8x8xf32>
    %225 = arith.mulf %220, %224 : vector<8x8xf32>
    %226 = arith.truncf %225 : vector<8x8xf32> to vector<8x8xbf16>
    %cst_138 = arith.constant dense<0.000000e+00> : vector<8x8xf32>
    %227 = tpu.matmul %226, %212, %cst_138 {dimension_numbers = #tpu.dot_dimension_numbers<[1], [0], [0], [1], [0, 0, 1, 1], [], []>} : vector<8x8xbf16>, vector<8x8xbf16>, vector<8x8xf32> -> vector<8x8xf32>
    %228 = arith.truncf %227 : vector<8x8xf32> to vector<8x8xbf16>
    %c16_139 = arith.constant 16 : index
    %c16_140 = arith.constant 16 : index
    %229 = vector.load %arg16[%c16_139, %c16_140] : memref<32x32xbf16, #tpu.memory_space<vmem>>, vector<8x8xbf16>
    tpu.vector_store %arg16[%c16_139, %c16_140], %228 {strides = array<i32>} : memref<32x32xbf16, #tpu.memory_space<vmem>>, vector<8x8xbf16>,
    %c16_141 = arith.constant 16 : index
    %c24_142 = arith.constant 24 : index
    %230 = vector.load %arg15[%c16_141, %c24_142] : memref<32x96xbf16, #tpu.memory_space<vmem>>, vector<8x8xbf16>
    %c16_143 = arith.constant 16 : index
    %c56_144 = arith.constant 56 : index
    %231 = vector.load %arg15[%c16_143, %c56_144] : memref<32x96xbf16, #tpu.memory_space<vmem>>, vector<8x8xbf16>
    %c16_145 = arith.constant 16 : index
    %c88_146 = arith.constant 88 : index
    %232 = vector.load %arg15[%c16_145, %c88_146] : memref<32x96xbf16, #tpu.memory_space<vmem>>, vector<8x8xbf16>
    %cst_147 = arith.constant dense<0.000000e+00> : vector<8x8xf32>
    %233 = tpu.matmul %230, %231, %cst_147 {dimension_numbers = #tpu.dot_dimension_numbers<[1], [1], [0], [0], [0, 0, 1, 0], [], []>} : vector<8x8xbf16>, vector<8x8xbf16>, vector<8x8xf32> -> vector<8x8xf32>
    %cst_148 = arith.constant 0.353553385 : f32
    %234 = vector.broadcast %cst_148 : f32 to vector<8x8xf32>
    %235 = arith.mulf %233, %234 : vector<8x8xf32>
    %cst_149 = arith.constant dense<0xFF800000> : vector<8xf32>
    %236 = vector.multi_reduction <maximumf>, %235, %cst_149 [1] : vector<8x8xf32> to vector<8xf32>
    %237 = vector.shape_cast %236 : vector<8xf32> to vector<8x1xf32>
    %238 = vector.broadcast %237 : vector<8x1xf32> to vector<8x8xf32>
    %239 = arith.subf %235, %238 : vector<8x8xf32>
    %240 = math.exp %239 : vector<8x8xf32>
    %cst_150 = arith.constant dense<0.000000e+00> : vector<8xf32>
    %241 = vector.multi_reduction <add>, %240, %cst_150 [1] : vector<8x8xf32> to vector<8xf32>
    %242 = vector.shape_cast %241 : vector<8xf32> to vector<8x1xf32>
    %243 = tpu.reciprocal %242 {approx = true} : vector<8x1xf32> -> vector<8x1xf32>
    %244 = vector.broadcast %243 : vector<8x1xf32> to vector<8x8xf32>
    %245 = arith.mulf %240, %244 : vector<8x8xf32>
    %246 = arith.truncf %245 : vector<8x8xf32> to vector<8x8xbf16>
    %cst_151 = arith.constant dense<0.000000e+00> : vector<8x8xf32>
    %247 = tpu.matmul %246, %232, %cst_151 {dimension_numbers = #tpu.dot_dimension_numbers<[1], [0], [0], [1], [0, 0, 1, 1], [], []>} : vector<8x8xbf16>, vector<8x8xbf16>, vector<8x8xf32> -> vector<8x8xf32>
    %248 = arith.truncf %247 : vector<8x8xf32> to vector<8x8xbf16>
    %c16_152 = arith.constant 16 : index
    %c24_153 = arith.constant 24 : index
    %249 = vector.load %arg16[%c16_152, %c24_153] : memref<32x32xbf16, #tpu.memory_space<vmem>>, vector<8x8xbf16>
    tpu.vector_store %arg16[%c16_152, %c24_153], %248 {strides = array<i32>} : memref<32x32xbf16, #tpu.memory_space<vmem>>, vector<8x8xbf16>,
    %c24_154 = arith.constant 24 : index
    %c0_155 = arith.constant 0 : index
    %250 = vector.load %arg15[%c24_154, %c0_155] : memref<32x96xbf16, #tpu.memory_space<vmem>>, vector<8x8xbf16>
    %c24_156 = arith.constant 24 : index
    %c32_157 = arith.constant 32 : index
    %251 = vector.load %arg15[%c24_156, %c32_157] : memref<32x96xbf16, #tpu.memory_space<vmem>>, vector<8x8xbf16>
    %c24_158 = arith.constant 24 : index
    %c64_159 = arith.constant 64 : index
    %252 = vector.load %arg15[%c24_158, %c64_159] : memref<32x96xbf16, #tpu.memory_space<vmem>>, vector<8x8xbf16>
    %cst_160 = arith.constant dense<0.000000e+00> : vector<8x8xf32>
    %253 = tpu.matmul %250, %251, %cst_160 {dimension_numbers = #tpu.dot_dimension_numbers<[1], [1], [0], [0], [0, 0, 1, 0], [], []>} : vector<8x8xbf16>, vector<8x8xbf16>, vector<8x8xf32> -> vector<8x8xf32>
    %cst_161 = arith.constant 0.353553385 : f32
    %254 = vector.broadcast %cst_161 : f32 to vector<8x8xf32>
    %255 = arith.mulf %253, %254 : vector<8x8xf32>
    %cst_162 = arith.constant dense<0xFF800000> : vector<8xf32>
    %256 = vector.multi_reduction <maximumf>, %255, %cst_162 [1] : vector<8x8xf32> to vector<8xf32>
    %257 = vector.shape_cast %256 : vector<8xf32> to vector<8x1xf32>
    %258 = vector.broadcast %257 : vector<8x1xf32> to vector<8x8xf32>
    %259 = arith.subf %255, %258 : vector<8x8xf32>
    %260 = math.exp %259 : vector<8x8xf32>
    %cst_163 = arith.constant dense<0.000000e+00> : vector<8xf32>
    %261 = vector.multi_reduction <add>, %260, %cst_163 [1] : vector<8x8xf32> to vector<8xf32>
    %262 = vector.shape_cast %261 : vector<8xf32> to vector<8x1xf32>
    %263 = tpu.reciprocal %262 {approx = true} : vector<8x1xf32> -> vector<8x1xf32>
    %264 = vector.broadcast %263 : vector<8x1xf32> to vector<8x8xf32>
    %265 = arith.mulf %260, %264 : vector<8x8xf32>
    %266 = arith.truncf %265 : vector<8x8xf32> to vector<8x8xbf16>
    %cst_164 = arith.constant dense<0.000000e+00> : vector<8x8xf32>
    %267 = tpu.matmul %266, %252, %cst_164 {dimension_numbers = #tpu.dot_dimension_numbers<[1], [0], [0], [1], [0, 0, 1, 1], [], []>} : vector<8x8xbf16>, vector<8x8xbf16>, vector<8x8xf32> -> vector<8x8xf32>
    %268 = arith.truncf %267 : vector<8x8xf32> to vector<8x8xbf16>
    %c24_165 = arith.constant 24 : index
    %c0_166 = arith.constant 0 : index
    %269 = vector.load %arg16[%c24_165, %c0_166] : memref<32x32xbf16, #tpu.memory_space<vmem>>, vector<8x8xbf16>
    tpu.vector_store %arg16[%c24_165, %c0_166], %268 {strides = array<i32>} : memref<32x32xbf16, #tpu.memory_space<vmem>>, vector<8x8xbf16>,
    %c24_167 = arith.constant 24 : index
    %c8_168 = arith.constant 8 : index
    %270 = vector.load %arg15[%c24_167, %c8_168] : memref<32x96xbf16, #tpu.memory_space<vmem>>, vector<8x8xbf16>
    %c24_169 = arith.constant 24 : index
    %c40_170 = arith.constant 40 : index
    %271 = vector.load %arg15[%c24_169, %c40_170] : memref<32x96xbf16, #tpu.memory_space<vmem>>, vector<8x8xbf16>
    %c24_171 = arith.constant 24 : index
    %c72_172 = arith.constant 72 : index
    %272 = vector.load %arg15[%c24_171, %c72_172] : memref<32x96xbf16, #tpu.memory_space<vmem>>, vector<8x8xbf16>
    %cst_173 = arith.constant dense<0.000000e+00> : vector<8x8xf32>
    %273 = tpu.matmul %270, %271, %cst_173 {dimension_numbers = #tpu.dot_dimension_numbers<[1], [1], [0], [0], [0, 0, 1, 0], [], []>} : vector<8x8xbf16>, vector<8x8xbf16>, vector<8x8xf32> -> vector<8x8xf32>
    %cst_174 = arith.constant 0.353553385 : f32
    %274 = vector.broadcast %cst_174 : f32 to vector<8x8xf32>
    %275 = arith.mulf %273, %274 : vector<8x8xf32>
    %cst_175 = arith.constant dense<0xFF800000> : vector<8xf32>
    %276 = vector.multi_reduction <maximumf>, %275, %cst_175 [1] : vector<8x8xf32> to vector<8xf32>
    %277 = vector.shape_cast %276 : vector<8xf32> to vector<8x1xf32>
    %278 = vector.broadcast %277 : vector<8x1xf32> to vector<8x8xf32>
    %279 = arith.subf %275, %278 : vector<8x8xf32>
    %280 = math.exp %279 : vector<8x8xf32>
    %cst_176 = arith.constant dense<0.000000e+00> : vector<8xf32>
    %281 = vector.multi_reduction <add>, %280, %cst_176 [1] : vector<8x8xf32> to vector<8xf32>
    %282 = vector.shape_cast %281 : vector<8xf32> to vector<8x1xf32>
    %283 = tpu.reciprocal %282 {approx = true} : vector<8x1xf32> -> vector<8x1xf32>
    %284 = vector.broadcast %283 : vector<8x1xf32> to vector<8x8xf32>
    %285 = arith.mulf %280, %284 : vector<8x8xf32>
    %286 = arith.truncf %285 : vector<8x8xf32> to vector<8x8xbf16>
    %cst_177 = arith.constant dense<0.000000e+00> : vector<8x8xf32>
    %287 = tpu.matmul %286, %272, %cst_177 {dimension_numbers = #tpu.dot_dimension_numbers<[1], [0], [0], [1], [0, 0, 1, 1], [], []>} : vector<8x8xbf16>, vector<8x8xbf16>, vector<8x8xf32> -> vector<8x8xf32>
    %288 = arith.truncf %287 : vector<8x8xf32> to vector<8x8xbf16>
    %c24_178 = arith.constant 24 : index
    %c8_179 = arith.constant 8 : index
    %289 = vector.load %arg16[%c24_178, %c8_179] : memref<32x32xbf16, #tpu.memory_space<vmem>>, vector<8x8xbf16>
    tpu.vector_store %arg16[%c24_178, %c8_179], %288 {strides = array<i32>} : memref<32x32xbf16, #tpu.memory_space<vmem>>, vector<8x8xbf16>,
    %c24_180 = arith.constant 24 : index
    %c16_181 = arith.constant 16 : index
    %290 = vector.load %arg15[%c24_180, %c16_181] : memref<32x96xbf16, #tpu.memory_space<vmem>>, vector<8x8xbf16>
    %c24_182 = arith.constant 24 : index
    %c48_183 = arith.constant 48 : index
    %291 = vector.load %arg15[%c24_182, %c48_183] : memref<32x96xbf16, #tpu.memory_space<vmem>>, vector<8x8xbf16>
    %c24_184 = arith.constant 24 : index
    %c80_185 = arith.constant 80 : index
    %292 = vector.load %arg15[%c24_184, %c80_185] : memref<32x96xbf16, #tpu.memory_space<vmem>>, vector<8x8xbf16>
    %cst_186 = arith.constant dense<0.000000e+00> : vector<8x8xf32>
    %293 = tpu.matmul %290, %291, %cst_186 {dimension_numbers = #tpu.dot_dimension_numbers<[1], [1], [0], [0], [0, 0, 1, 0], [], []>} : vector<8x8xbf16>, vector<8x8xbf16>, vector<8x8xf32> -> vector<8x8xf32>
    %cst_187 = arith.constant 0.353553385 : f32
    %294 = vector.broadcast %cst_187 : f32 to vector<8x8xf32>
    %295 = arith.mulf %293, %294 : vector<8x8xf32>
    %cst_188 = arith.constant dense<0xFF800000> : vector<8xf32>
    %296 = vector.multi_reduction <maximumf>, %295, %cst_188 [1] : vector<8x8xf32> to vector<8xf32>
    %297 = vector.shape_cast %296 : vector<8xf32> to vector<8x1xf32>
    %298 = vector.broadcast %297 : vector<8x1xf32> to vector<8x8xf32>
    %299 = arith.subf %295, %298 : vector<8x8xf32>
    %300 = math.exp %299 : vector<8x8xf32>
    %cst_189 = arith.constant dense<0.000000e+00> : vector<8xf32>
    %301 = vector.multi_reduction <add>, %300, %cst_189 [1] : vector<8x8xf32> to vector<8xf32>
    %302 = vector.shape_cast %301 : vector<8xf32> to vector<8x1xf32>
    %303 = tpu.reciprocal %302 {approx = true} : vector<8x1xf32> -> vector<8x1xf32>
    %304 = vector.broadcast %303 : vector<8x1xf32> to vector<8x8xf32>
    %305 = arith.mulf %300, %304 : vector<8x8xf32>
    %306 = arith.truncf %305 : vector<8x8xf32> to vector<8x8xbf16>
    %cst_190 = arith.constant dense<0.000000e+00> : vector<8x8xf32>
    %307 = tpu.matmul %306, %292, %cst_190 {dimension_numbers = #tpu.dot_dimension_numbers<[1], [0], [0], [1], [0, 0, 1, 1], [], []>} : vector<8x8xbf16>, vector<8x8xbf16>, vector<8x8xf32> -> vector<8x8xf32>
    %308 = arith.truncf %307 : vector<8x8xf32> to vector<8x8xbf16>
    %c24_191 = arith.constant 24 : index
    %c16_192 = arith.constant 16 : index
    %309 = vector.load %arg16[%c24_191, %c16_192] : memref<32x32xbf16, #tpu.memory_space<vmem>>, vector<8x8xbf16>
    tpu.vector_store %arg16[%c24_191, %c16_192], %308 {strides = array<i32>} : memref<32x32xbf16, #tpu.memory_space<vmem>>, vector<8x8xbf16>,
    %c24_193 = arith.constant 24 : index
    %c24_194 = arith.constant 24 : index
    %310 = vector.load %arg15[%c24_193, %c24_194] : memref<32x96xbf16, #tpu.memory_space<vmem>>, vector<8x8xbf16>
    %c24_195 = arith.constant 24 : index
    %c56_196 = arith.constant 56 : index
    %311 = vector.load %arg15[%c24_195, %c56_196] : memref<32x96xbf16, #tpu.memory_space<vmem>>, vector<8x8xbf16>
    %c24_197 = arith.constant 24 : index
    %c88_198 = arith.constant 88 : index
    %312 = vector.load %arg15[%c24_197, %c88_198] : memref<32x96xbf16, #tpu.memory_space<vmem>>, vector<8x8xbf16>
    %cst_199 = arith.constant dense<0.000000e+00> : vector<8x8xf32>
    %313 = tpu.matmul %310, %311, %cst_199 {dimension_numbers = #tpu.dot_dimension_numbers<[1], [1], [0], [0], [0, 0, 1, 0], [], []>} : vector<8x8xbf16>, vector<8x8xbf16>, vector<8x8xf32> -> vector<8x8xf32>
    %cst_200 = arith.constant 0.353553385 : f32
    %314 = vector.broadcast %cst_200 : f32 to vector<8x8xf32>
    %315 = arith.mulf %313, %314 : vector<8x8xf32>
    %cst_201 = arith.constant dense<0xFF800000> : vector<8xf32>
    %316 = vector.multi_reduction <maximumf>, %315, %cst_201 [1] : vector<8x8xf32> to vector<8xf32>
    %317 = vector.shape_cast %316 : vector<8xf32> to vector<8x1xf32>
    %318 = vector.broadcast %317 : vector<8x1xf32> to vector<8x8xf32>
    %319 = arith.subf %315, %318 : vector<8x8xf32>
    %320 = math.exp %319 : vector<8x8xf32>
    %cst_202 = arith.constant dense<0.000000e+00> : vector<8xf32>
    %321 = vector.multi_reduction <add>, %320, %cst_202 [1] : vector<8x8xf32> to vector<8xf32>
    %322 = vector.shape_cast %321 : vector<8xf32> to vector<8x1xf32>
    %323 = tpu.reciprocal %322 {approx = true} : vector<8x1xf32> -> vector<8x1xf32>
    %324 = vector.broadcast %323 : vector<8x1xf32> to vector<8x8xf32>
    %325 = arith.mulf %320, %324 : vector<8x8xf32>
    %326 = arith.truncf %325 : vector<8x8xf32> to vector<8x8xbf16>
    %cst_203 = arith.constant dense<0.000000e+00> : vector<8x8xf32>
    %327 = tpu.matmul %326, %312, %cst_203 {dimension_numbers = #tpu.dot_dimension_numbers<[1], [0], [0], [1], [0, 0, 1, 1], [], []>} : vector<8x8xbf16>, vector<8x8xbf16>, vector<8x8xf32> -> vector<8x8xf32>
    %328 = arith.truncf %327 : vector<8x8xf32> to vector<8x8xbf16>
    %c24_204 = arith.constant 24 : index
    %c24_205 = arith.constant 24 : index
    %329 = vector.load %arg16[%c24_204, %c24_205] : memref<32x32xbf16, #tpu.memory_space<vmem>>, vector<8x8xbf16>
    tpu.vector_store %arg16[%c24_204, %c24_205], %328 {strides = array<i32>} : memref<32x32xbf16, #tpu.memory_space<vmem>>, vector<8x8xbf16>,
    %c0_206 = arith.constant 0 : index
    %c0_207 = arith.constant 0 : index
    %330 = vector.load %arg16[%c0_206, %c0_207] : memref<32x32xbf16, #tpu.memory_space<vmem>>, vector<32x32xbf16>
    %c0_208 = arith.constant 0 : index
    %c0_209 = arith.constant 0 : index
    %331 = vector.load %arg4[%c0_208, %c0_209] : memref<32x32xbf16, #tpu.memory_space<vmem>>, vector<32x32xbf16>
    %cst_210 = arith.constant dense<0.000000e+00> : vector<32x32xf32>
    %332 = tpu.matmul %330, %331, %cst_210 {dimension_numbers = #tpu.dot_dimension_numbers<[1], [0], [0], [1], [0, 0, 1, 1], [], []>} : vector<32x32xbf16>, vector<32x32xbf16>, vector<32x32xf32> -> vector<32x32xf32>
    %c0_211 = arith.constant 0 : index
    %c0_212 = arith.constant 0 : index
    %333 = vector.load %arg5[%c0_211, %c0_212] : memref<1x32xf32, #tpu.memory_space<vmem>>, vector<1x32xf32>
    %334 = vector.broadcast %333 : vector<1x32xf32> to vector<32x32xf32>
    %335 = arith.addf %332, %334 : vector<32x32xf32>
    %336 = arith.addf %335, %0 : vector<32x32xf32>
    %cst_213 = arith.constant dense<0.000000e+00> : vector<32xf32>
    %337 = vector.multi_reduction <add>, %336, %cst_213 [1] : vector<32x32xf32> to vector<32xf32>
    %338 = vector.shape_cast %337 : vector<32xf32> to vector<32x1xf32>
    %cst_214 = arith.constant 3.200000e+01 : f32
    %339 = vector.broadcast %cst_214 : f32 to vector<32x1xf32>
    %340 = arith.divf %338, %339 : vector<32x1xf32>
    %341 = vector.broadcast %340 : vector<32x1xf32> to vector<32x32xf32>
    %342 = arith.subf %336, %341 : vector<32x32xf32>
    %343 = arith.mulf %342, %342 : vector<32x32xf32>
    %cst_215 = arith.constant dense<0.000000e+00> : vector<32xf32>
    %344 = vector.multi_reduction <add>, %343, %cst_215 [1] : vector<32x32xf32> to vector<32xf32>
    %345 = vector.shape_cast %344 : vector<32xf32> to vector<32x1xf32>
    %cst_216 = arith.constant 3.200000e+01 : f32
    %346 = vector.broadcast %cst_216 : f32 to vector<32x1xf32>
    %347 = arith.divf %345, %346 : vector<32x1xf32>
    %348 = vector.broadcast %340 : vector<32x1xf32> to vector<32x32xf32>
    %349 = arith.subf %336, %348 : vector<32x32xf32>
    %cst_217 = arith.constant 9.99999974E-6 : f32
    %350 = vector.broadcast %cst_217 : f32 to vector<32x1xf32>
    %351 = arith.addf %347, %350 : vector<32x1xf32>
    %352 = math.rsqrt %351 : vector<32x1xf32>
    %353 = vector.broadcast %352 : vector<32x1xf32> to vector<32x32xf32>
    %354 = arith.mulf %349, %353 : vector<32x32xf32>
    %c0_218 = arith.constant 0 : index
    %c0_219 = arith.constant 0 : index
    %355 = vector.load %arg6[%c0_218, %c0_219] : memref<1x32xf32, #tpu.memory_space<vmem>>, vector<1x32xf32>
    %356 = vector.broadcast %355 : vector<1x32xf32> to vector<32x32xf32>
    %357 = arith.mulf %354, %356 : vector<32x32xf32>
    %c0_220 = arith.constant 0 : index
    %c0_221 = arith.constant 0 : index
    %358 = vector.load %arg7[%c0_220, %c0_221] : memref<1x32xf32, #tpu.memory_space<vmem>>, vector<1x32xf32>
    %359 = vector.broadcast %358 : vector<1x32xf32> to vector<32x32xf32>
    %360 = arith.addf %357, %359 : vector<32x32xf32>
    %361 = arith.truncf %360 : vector<32x32xf32> to vector<32x32xbf16>
    %c0_222 = arith.constant 0 : index
    %c0_223 = arith.constant 0 : index
    %362 = vector.load %arg8[%c0_222, %c0_223] : memref<32x64xbf16, #tpu.memory_space<vmem>>, vector<32x64xbf16>
    %cst_224 = arith.constant dense<0.000000e+00> : vector<32x64xf32>
    %363 = tpu.matmul %361, %362, %cst_224 {dimension_numbers = #tpu.dot_dimension_numbers<[1], [0], [0], [1], [0, 0, 1, 1], [], []>} : vector<32x32xbf16>, vector<32x64xbf16>, vector<32x64xf32> -> vector<32x64xf32>
    %c0_225 = arith.constant 0 : index
    %c0_226 = arith.constant 0 : index
    %364 = vector.load %arg9[%c0_225, %c0_226] : memref<1x64xf32, #tpu.memory_space<vmem>>, vector<1x64xf32>
    %365 = vector.broadcast %364 : vector<1x64xf32> to vector<32x64xf32>
    %366 = arith.addf %363, %365 : vector<32x64xf32>
    %367 = arith.mulf %366, %366 : vector<32x64xf32>
    %368 = arith.mulf %366, %367 : vector<32x64xf32>
    %cst_227 = arith.constant 4.471500e-02 : f32
    %369 = vector.broadcast %cst_227 : f32 to vector<32x64xf32>
    %370 = arith.mulf %369, %368 : vector<32x64xf32>
    %371 = arith.addf %366, %370 : vector<32x64xf32>
    %cst_228 = arith.constant 0.797884583 : f32
    %372 = vector.broadcast %cst_228 : f32 to vector<32x64xf32>
    %373 = arith.mulf %372, %371 : vector<32x64xf32>
    %374 = math.tanh %373 : vector<32x64xf32>
    %cst_229 = arith.constant 1.000000e+00 : f32
    %375 = vector.broadcast %cst_229 : f32 to vector<32x64xf32>
    %376 = arith.addf %375, %374 : vector<32x64xf32>
    %cst_230 = arith.constant 5.000000e-01 : f32
    %377 = vector.broadcast %cst_230 : f32 to vector<32x64xf32>
    %378 = arith.mulf %377, %376 : vector<32x64xf32>
    %379 = arith.mulf %366, %378 : vector<32x64xf32>
    %380 = arith.truncf %379 : vector<32x64xf32> to vector<32x64xbf16>
    %c0_231 = arith.constant 0 : index
    %c0_232 = arith.constant 0 : index
    %381 = vector.load %arg10[%c0_231, %c0_232] : memref<64x32xbf16, #tpu.memory_space<vmem>>, vector<64x32xbf16>
    %cst_233 = arith.constant dense<0.000000e+00> : vector<32x32xf32>
    %382 = tpu.matmul %380, %381, %cst_233 {dimension_numbers = #tpu.dot_dimension_numbers<[1], [0], [0], [1], [0, 0, 1, 1], [], []>} : vector<32x64xbf16>, vector<64x32xbf16>, vector<32x32xf32> -> vector<32x32xf32>
    %c0_234 = arith.constant 0 : index
    %c0_235 = arith.constant 0 : index
    %383 = vector.load %arg11[%c0_234, %c0_235] : memref<1x32xf32, #tpu.memory_space<vmem>>, vector<1x32xf32>
    %384 = vector.broadcast %383 : vector<1x32xf32> to vector<32x32xf32>
    %385 = arith.addf %382, %384 : vector<32x32xf32>
    %386 = arith.addf %385, %360 : vector<32x32xf32>
    %cst_236 = arith.constant dense<0.000000e+00> : vector<32xf32>
    %387 = vector.multi_reduction <add>, %386, %cst_236 [1] : vector<32x32xf32> to vector<32xf32>
    %388 = vector.shape_cast %387 : vector<32xf32> to vector<32x1xf32>
    %cst_237 = arith.constant 3.200000e+01 : f32
    %389 = vector.broadcast %cst_237 : f32 to vector<32x1xf32>
    %390 = arith.divf %388, %389 : vector<32x1xf32>
    %391 = vector.broadcast %390 : vector<32x1xf32> to vector<32x32xf32>
    %392 = arith.subf %386, %391 : vector<32x32xf32>
    %393 = arith.mulf %392, %392 : vector<32x32xf32>
    %cst_238 = arith.constant dense<0.000000e+00> : vector<32xf32>
    %394 = vector.multi_reduction <add>, %393, %cst_238 [1] : vector<32x32xf32> to vector<32xf32>
    %395 = vector.shape_cast %394 : vector<32xf32> to vector<32x1xf32>
    %cst_239 = arith.constant 3.200000e+01 : f32
    %396 = vector.broadcast %cst_239 : f32 to vector<32x1xf32>
    %397 = arith.divf %395, %396 : vector<32x1xf32>
    %398 = vector.broadcast %390 : vector<32x1xf32> to vector<32x32xf32>
    %399 = arith.subf %386, %398 : vector<32x32xf32>
    %cst_240 = arith.constant 9.99999974E-6 : f32
    %400 = vector.broadcast %cst_240 : f32 to vector<32x1xf32>
    %401 = arith.addf %397, %400 : vector<32x1xf32>
    %402 = math.rsqrt %401 : vector<32x1xf32>
    %403 = vector.broadcast %402 : vector<32x1xf32> to vector<32x32xf32>
    %404 = arith.mulf %399, %403 : vector<32x32xf32>
    %c0_241 = arith.constant 0 : index
    %c0_242 = arith.constant 0 : index
    %405 = vector.load %arg12[%c0_241, %c0_242] : memref<1x32xf32, #tpu.memory_space<vmem>>, vector<1x32xf32>
    %406 = vector.broadcast %405 : vector<1x32xf32> to vector<32x32xf32>
    %407 = arith.mulf %404, %406 : vector<32x32xf32>
    %c0_243 = arith.constant 0 : index
    %c0_244 = arith.constant 0 : index
    %408 = vector.load %arg13[%c0_243, %c0_244] : memref<1x32xf32, #tpu.memory_space<vmem>>, vector<1x32xf32>
    %409 = vector.broadcast %408 : vector<1x32xf32> to vector<32x32xf32>
    %410 = arith.addf %407, %409 : vector<32x32xf32>
    %c0_245 = arith.constant 0 : index
    %c0_246 = arith.constant 0 : index
    %411 = vector.load %arg14[%c0_245, %c0_246] : memref<32x32xf32, #tpu.memory_space<vmem>>, vector<32x32xf32>
    tpu.vector_store %arg14[%c0_245, %c0_246], %410 {strides = array<i32>} : memref<32x32xf32, #tpu.memory_space<vmem>>, vector<32x32xf32>,
    return
  }
  func.func @transform_0(%arg0: i32) -> (i32, i32) {
    %c0_i32 = arith.constant 0 : i32
    %c0_i32_0 = arith.constant 0 : i32
    return %arg0, %c0_i32 : i32, i32
  }
  func.func @transform_1(%arg0: i32) -> (i32, i32) {
    %c0_i32 = arith.constant 0 : i32
    %c0_i32_0 = arith.constant 0 : i32
    %c0_i32_1 = arith.constant 0 : i32
    return %c0_i32, %c0_i32_0 : i32, i32
  }
  func.func @transform_2(%arg0: i32) -> (i32, i32) {
    %c0_i32 = arith.constant 0 : i32
    %c0_i32_0 = arith.constant 0 : i32
    %c0_i32_1 = arith.constant 0 : i32
    return %c0_i32, %c0_i32_0 : i32, i32
  }
  func.func @transform_3(%arg0: i32) -> (i32, i32) {
    %c0_i32 = arith.constant 0 : i32
    %c0_i32_0 = arith.constant 0 : i32
    %c0_i32_1 = arith.constant 0 : i32
    return %c0_i32, %c0_i32_0 : i32, i32
  }
  func.func @transform_4(%arg0: i32) -> (i32, i32) {
    %c0_i32 = arith.constant 0 : i32
    %c0_i32_0 = arith.constant 0 : i32
    %c0_i32_1 = arith.constant 0 : i32
    return %c0_i32, %c0_i32_0 : i32, i32
  }
  func.func @transform_5(%arg0: i32) -> (i32, i32) {
    %c0_i32 = arith.constant 0 : i32
    %c0_i32_0 = arith.constant 0 : i32
    %c0_i32_1 = arith.constant 0 : i32
    return %c0_i32, %c0_i32_0 : i32, i32
  }
  func.func @transform_6(%arg0: i32) -> (i32, i32) {
    %c0_i32 = arith.constant 0 : i32
    %c0_i32_0 = arith.constant 0 : i32
    %c0_i32_1 = arith.constant 0 : i32
    return %c0_i32, %c0_i32_0 : i32, i32
  }
  func.func @transform_7(%arg0: i32) -> (i32, i32) {
    %c0_i32 = arith.constant 0 : i32
    %c0_i32_0 = arith.constant 0 : i32
    %c0_i32_1 = arith.constant 0 : i32
    return %c0_i32, %c0_i32_0 : i32, i32
  }
  func.func @transform_8(%arg0: i32) -> (i32, i32) {
    %c0_i32 = arith.constant 0 : i32
    %c0_i32_0 = arith.constant 0 : i32
    %c0_i32_1 = arith.constant 0 : i32
    return %c0_i32, %c0_i32_0 : i32, i32
  }
  func.func @transform_9(%arg0: i32) -> (i32, i32) {
    %c0_i32 = arith.constant 0 : i32
    %c0_i32_0 = arith.constant 0 : i32
    %c0_i32_1 = arith.constant 0 : i32
    return %c0_i32, %c0_i32_0 : i32, i32
  }
  func.func @transform_10(%arg0: i32) -> (i32, i32) {
    %c0_i32 = arith.constant 0 : i32
    %c0_i32_0 = arith.constant 0 : i32
    %c0_i32_1 = arith.constant 0 : i32
    return %c0_i32, %c0_i32_0 : i32, i32
  }
  func.func @transform_11(%arg0: i32) -> (i32, i32) {
    %c0_i32 = arith.constant 0 : i32
    %c0_i32_0 = arith.constant 0 : i32
    %c0_i32_1 = arith.constant 0 : i32
    return %c0_i32, %c0_i32_0 : i32, i32
  }
  func.func @transform_12(%arg0: i32) -> (i32, i32) {
    %c0_i32 = arith.constant 0 : i32
    %c0_i32_0 = arith.constant 0 : i32
    %c0_i32_1 = arith.constant 0 : i32
    return %c0_i32, %c0_i32_0 : i32, i32
  }
  func.func @transform_13(%arg0: i32) -> (i32, i32) {
    %c0_i32 = arith.constant 0 : i32
    %c0_i32_0 = arith.constant 0 : i32
    return %arg0, %c0_i32 : i32, i32
  }
}

</mosaic_0001>

<llo_original>
// kernel: tpu_custom_call.1
$region0: #{tpu_custom_call.1}
  #allocation0 [shape = 'u32[]', space=smem, size = 0x4, offset = 0x4, fixed_abs, tag = 'smem constant byte address 0x4 - core index']
  #allocation1 [shape = 'u32[72,128]{1,0:T(1,128)}', space=vmem, size = 0x9000, scoped, tag = 'internal scratch']
  #allocation2 [shape = 'bf16[32,96]{1,0:T(8,128)(2,1)}', space=vmem, size = 0x2000, scoped, tag = 'scratch operand']
  #allocation3 [shape = 'bf16[32,32]{1,0:T(8,128)(2,1)}', space=vmem, size = 0x2000, scoped, tag = 'scratch operand']
  %s0 = inlined_call_operand.vmem [shape: f32[32,32], index: 0, kind: input, shape index: {}]
  %s1 = inlined_call_operand.vmem [shape: bf16[32,96], index: 1, kind: input, shape index: {}]
  %s2 = inlined_call_operand.vmem [shape: f32[1,96], index: 2, kind: input, shape index: {}]
  %s3 = inlined_call_operand.hbm [shape: bf16[32,32], index: 3, kind: input, shape index: {}]
  %s4 = inlined_call_operand.vmem [shape: f32[1,32], index: 4, kind: input, shape index: {}]
  %s5 = inlined_call_operand.vmem [shape: f32[1,32], index: 5, kind: input, shape index: {}]
  %s6 = inlined_call_operand.vmem [shape: f32[1,32], index: 6, kind: input, shape index: {}]
  %s7 = inlined_call_operand.hbm [shape: bf16[32,64], index: 7, kind: input, shape index: {}]
  %s8 = inlined_call_operand.vmem [shape: f32[1,64], index: 8, kind: input, shape index: {}]
  %s9 = inlined_call_operand.vmem [shape: bf16[64,32], index: 9, kind: input, shape index: {}]
  %s10 = inlined_call_operand.vmem [shape: f32[1,32], index: 10, kind: input, shape index: {}]
  %s11 = inlined_call_operand.vmem [shape: f32[1,32], index: 11, kind: input, shape index: {}]
  %s12 = inlined_call_operand.vmem [shape: f32[1,32], index: 12, kind: input, shape index: {}]
  %s13 = inlined_call_operand.hbm [shape: f32[32,32], index: 13, kind: output, shape index: {}]
  %s14 = sld [smem:[#allocation0]]
  $region70: #{tpu_custom_call.1} parent=0
    _
  %s16 = ssub.s32 1, %s14
  %s17 = scalar_select 0, %s16, %s14
  $region1: #{tpu_custom_call.1} parent=0
    #allocation4 [shape = 'u8[8192]{0}', space=vmem, size = 0x2000, scoped, tag = 'input window, operand 3, single buffered']
    #allocation5 [shape = 's32[1]{0}', space=sflag, size = 0x4, scoped, tag = 'scoped memory for tpu_custom_call.1']
    #allocation6 [shape = 's32[1]{0}', space=sflag, size = 0x4, scoped, tag = 'scoped memory for tpu_custom_call.1']
    #allocation7 [shape = 'u8[8192]{0}', space=vmem, size = 0x2000, scoped, tag = 'input window, operand 7, single buffered']
    #allocation8 [shape = 's32[1]{0}', space=sflag, size = 0x4, scoped, tag = 'scoped memory for tpu_custom_call.1']
    #allocation9 [shape = 'u8[16384]{0}', space=vmem, size = 0x4000, scoped, tag = 'output window, operand 0, single buffered']
    %18 = vsyncpa [#allocation5], 0
    %19 = vsyncpa [#allocation8], 0
    %20 = vsyncpa [#allocation6], 0
    // Predicated region
    $region2: #{tpu_custom_call.1} parent=1 // pred_check
      _
    $region3: #{tpu_custom_call.1} parent=1 // pred_check_branch
      %22 = sbr.rel (0) target = $region5
    $region4: #{tpu_custom_call.1} parent=1 // pred_region
      _
    $region5: #{tpu_custom_call.1} parent=1 // pred_fallthru
      _
    // Predicated region
    $region6: #{tpu_custom_call.1} parent=1 // pred_check
      _
    $region7: #{tpu_custom_call.1} parent=1 // pred_check_branch
      %24 = sbr.rel (0) target = $region9
    $region8: #{tpu_custom_call.1} parent=1 // pred_region
      _
    $region9: #{tpu_custom_call.1} parent=1 // pred_fallthru
      _
    // Predicated region
    $region10: #{tpu_custom_call.1} parent=1 // pred_check
      _
    $region11: #{tpu_custom_call.1} parent=1 // pred_check_branch
      %26 = sbr.rel (0) target = $region13
    $region12: #{tpu_custom_call.1} parent=1 // pred_region
      _
    $region13: #{tpu_custom_call.1} parent=1 // pred_fallthru
      _
    // Predicated region
    $region14: #{tpu_custom_call.1} parent=1 // pred_check
      _
    $region15: #{tpu_custom_call.1} parent=1 // pred_check_branch
      %28 = sbr.rel (0) target = $region17
    $region16: #{tpu_custom_call.1} parent=1 // pred_region
      %30 = vsyncadd [#allocation5], 0
      %s31 = sshll.u32 %s3, 4
      %s32 = int_to_ptr.hbm [resolvable:$true] %s31
      %s33 = sshll.u32 [#allocation4], 4
      %s34 = int_to_ptr.vmem [resolvable:$true] %s33
      %39 = dma.hbm_to_vmem [thread:$0]  %s32, 256, %s34, [#allocation5], 64, 64, 4
    $region17: #{tpu_custom_call.1} parent=1 // pred_fallthru
      _
    // Predicated region
    $region18: #{tpu_custom_call.1} parent=1 // pred_check
      _
    $region19: #{tpu_custom_call.1} parent=1 // pred_check_branch
      %41 = sbr.rel (0) target = $region21
    $region20: #{tpu_custom_call.1} parent=1 // pred_region
      _
    $region21: #{tpu_custom_call.1} parent=1 // pred_fallthru
      _
    // Predicated region
    $region22: #{tpu_custom_call.1} parent=1 // pred_check
      _
    $region23: #{tpu_custom_call.1} parent=1 // pred_check_branch
      %43 = sbr.rel (0) target = $region25
    $region24: #{tpu_custom_call.1} parent=1 // pred_region
      _
    $region25: #{tpu_custom_call.1} parent=1 // pred_fallthru
      _
    // Predicated region
    $region26: #{tpu_custom_call.1} parent=1 // pred_check
      _
    $region27: #{tpu_custom_call.1} parent=1 // pred_check_branch
      %45 = sbr.rel (0) target = $region29
    $region28: #{tpu_custom_call.1} parent=1 // pred_region
      _
    $region29: #{tpu_custom_call.1} parent=1 // pred_fallthru
      _
    // Predicated region
    $region30: #{tpu_custom_call.1} parent=1 // pred_check
      _
    $region31: #{tpu_custom_call.1} parent=1 // pred_check_branch
      %47 = sbr.rel (0) target = $region33
    $region32: #{tpu_custom_call.1} parent=1 // pred_region
      %49 = vsyncadd [#allocation8], 0
      %s50 = sshll.u32 %s7, 4
      %s51 = int_to_ptr.hbm [resolvable:$true] %s50
      %s52 = sshll.u32 [#allocation7], 4
      %s53 = int_to_ptr.vmem [resolvable:$true] %s52
      %58 = dma.hbm_to_vmem [thread:$0]  %s51, 256, %s53, [#allocation8], 64, 64, 4
    $region33: #{tpu_custom_call.1} parent=1 // pred_fallthru
      _
    // Predicated region
    $region34: #{tpu_custom_call.1} parent=1 // pred_check
      _
    $region35: #{tpu_custom_call.1} parent=1 // pred_check_branch
      %60 = sbr.rel (0) target = $region37
    $region36: #{tpu_custom_call.1} parent=1 // pred_region
      _
    $region37: #{tpu_custom_call.1} parent=1 // pred_fallthru
      _
    // Predicated region
    $region38: #{tpu_custom_call.1} parent=1 // pred_check
      _
    $region39: #{tpu_custom_call.1} parent=1 // pred_check_branch
      %62 = sbr.rel (0) target = $region41
    $region40: #{tpu_custom_call.1} parent=1 // pred_region
      _
    $region41: #{tpu_custom_call.1} parent=1 // pred_fallthru
      _
    // Predicated region
    $region42: #{tpu_custom_call.1} parent=1 // pred_check
      _
    $region43: #{tpu_custom_call.1} parent=1 // pred_check_branch
      %64 = sbr.rel (0) target = $region45
    $region44: #{tpu_custom_call.1} parent=1 // pred_region
      _
    $region45: #{tpu_custom_call.1} parent=1 // pred_fallthru
      _
    // Predicated region
    $region46: #{tpu_custom_call.1} parent=1 // pred_check
      _
    $region47: #{tpu_custom_call.1} parent=1 // pred_check_branch
      %66 = sbr.rel (0) target = $region49
    $region48: #{tpu_custom_call.1} parent=1 // pred_region
      _
    $region49: #{tpu_custom_call.1} parent=1 // pred_fallthru
      _
    // Predicated region
    $region50: #{tpu_custom_call.1} parent=1 // pred_check
      _
    $region51: #{tpu_custom_call.1} parent=1 // pred_check_branch
      %68 = sbr.rel (0) target = $region53
    $region52: #{tpu_custom_call.1} parent=1 // pred_region
      _
    $region53: #{tpu_custom_call.1} parent=1 // pred_fallthru
      _
    // Predicated region
    $region54: #{tpu_custom_call.1} parent=1 // pred_check
      _
    $region55: #{tpu_custom_call.1} parent=1 // pred_check_branch
      %70 = sbr.rel (0) target = $region57
    $region56: #{tpu_custom_call.1} parent=1 // pred_region
      %72 = dma.done [#allocation5], 256
    $region57: #{tpu_custom_call.1} parent=1 // pred_fallthru
      _
    // Predicated region
    $region58: #{tpu_custom_call.1} parent=1 // pred_check
      _
    $region59: #{tpu_custom_call.1} parent=1 // pred_check_branch
      %74 = sbr.rel (0) target = $region61
    $region60: #{tpu_custom_call.1} parent=1 // pred_region
      %76 = dma.done [#allocation8], 256
    $region61: #{tpu_custom_call.1} parent=1 // pred_fallthru
      _
    %v78 = vld [vmem:[%s0] sm:$0xff]
    %v79 = vld [vmem:[%s0 + $0x8] sm:$0xff]
    %v80 = vld [vmem:[%s0 + $0x10] sm:$0xff]
    %v81 = vld [vmem:[%s0 + $0x18] sm:$0xff]
    %v82 = vpack.c.bf16 %v79, %v78
    %v83 = vpack.c.bf16 %v81, %v80
    %v84 = vld [vmem:[%s1] sm:$0xf]
    %v85 = vld [vmem:[%s1 + $0x4] sm:$0xf]
    %v86 = vld [vmem:[%s1 + $0x8] sm:$0xf]
    %v87 = vld [vmem:[%s1 + $0xc] sm:$0xf]
    %v88 = vld [vmem:[%s2] sm:$0x1]
    %v90 = vperm.slane %v88, 0
    %v96 = vunpack.c.l.b16 %v84
    %v97 = vunpack.c.l.b16 %v85
    %v98 = vunpack.c.l.b16 %v86
    %v99 = vunpack.c.l.b16 %v87
    %v100 = vpack.c.b16 %v97, %v96
    %v101 = vpack.c.b16 %v99, %v98
    %vm104 = vcmask 261120
    %v106 = vsel %vm104, %v82, 0
    %v109 = vsel %vm104, %v83, 0
    %111 = vmatpush.bf16.msra.mxu0 0
    %112 = vmatpush.bf16.msra.mxu0 0
    %113 = vmatpush.bf16.msra.mxu0 0
    %114 = vmatpush.bf16.msra.mxu0 0
    %115 = vmatpush.bf16.msra.mxu0 0
    %116 = vmatpush.bf16.msra.mxu0 0
    %117 = vmatpush.bf16.msra.mxu0 %v101
    %118 = vmatpush.bf16.msra.mxu0 %v100
    %119 = vmatmul.bf16.gmra.mxu0 %v106
    %v120 = vpop.f32.mrf.mxu0
    %v121 = vadd.f32 %v90, %v120
    %v122 = vpop.f32.mrf.mxu0
    %v123 = vadd.f32 %v90, %v122
    %124 = vmatmul.bf16.gmra.mxu0 %v109
    %v125 = vpop.f32.mrf.mxu0
    %v126 = vadd.f32 %v90, %v125
    %v127 = vpop.f32.mrf.mxu0
    %v128 = vadd.f32 %v90, %v127
    %129 = vdwg.mxu0
    %v130 = vpack.c.bf16 %v121, %v121
    %v131 = vpack.c.bf16 %v123, %v123
    %v132 = vpack.c.bf16 %v126, %v126
    %v133 = vpack.c.bf16 %v128, %v128
    %vm134 = vcmask 781312
    %135 = vst.msk [vmem:[#allocation2] sm:$0xf] %vm134, %v130
    %136 = vst.msk [vmem:[#allocation2 + $0x4] sm:$0xf] %vm134, %v131
    %137 = vst.msk [vmem:[#allocation2 + $0x8] sm:$0xf] %vm134, %v132
    %138 = vst.msk [vmem:[#allocation2 + $0xc] sm:$0xf] %vm134, %v133
    %v139 = vld [vmem:[#allocation2] sm:$0xf]
    %v141 = vunpack.c.l.b16 %v139
    %v142 = vpack.c.b16 %v141, %v141
    %143 = vrot.lane.b32.xlu0 %v142, 96
    %v144 = vpop.permute.xlu0 %143
    %vm145 = vcmask 64512
    %v147 = vsel %vm145, %v139, 0
    %v150 = vsel %vm145, %v144, 0
    %152 = vmatpush.bf16.xpose.msra.mxu0 0
    %153 = vmatpush.bf16.xpose.msra.mxu0 0
    %154 = vmatpush.bf16.xpose.msra.mxu0 0
    %155 = vmatpush.bf16.xpose.msra.mxu0 0
    %156 = vmatpush.bf16.xpose.msra.mxu0 0
    %157 = vmatpush.bf16.xpose.msra.mxu0 0
    %158 = vmatpush.bf16.xpose.msra.mxu0 0
    %159 = vmatpush.bf16.xpose.msra.mxu0 %v150
    %160 = vmatmul.bf16.gmra.mxu0 %v147
    %v161 = vpop.f32.mrf.mxu0
    %v162 = vadd.f32 0.0, %v161
    %v163 = vpop.f32.mrf.mxu0
    %164 = vdwg.mxu0
    %v165 = vmul.f32 %v162, 0.35355338
    %v166 = vsel %vm145, %v165, -inf
    %167 = vmax.xlane.f32.xlu0 %v166
    %v168 = vpop.xlane.xlu0 %167
    %v169 = vsub.f32 %v165, %v168
    %v170 = vmul.f32 %v169, 1.442695
    %v171 = vpow.pop %v170
    %v172 = vsel %vm145, %v171, 0.0
    %173 = vadd.xlane.f32.xlu0 %v172
    %v174 = vpop.xlane.xlu0 %173
    %v175 = vrcp.pop %v174
    %v176 = vmul.f32 %v171, %v175
    %v177 = vpack.c.bf16 %v176, %v176
    %178 = vrot.lane.b32.xlu0 %v142, 64
    %v179 = vpop.permute.xlu0 %178
    %v181 = vsel %vm145, %v177, 0
    %vm183 = vcmask 1043456
    %v185 = vsel %vm183, %v179, 0
    %187 = vmatpush.bf16.msra.mxu0 0
    %188 = vmatpush.bf16.msra.mxu0 0
    %189 = vmatpush.bf16.msra.mxu0 0
    %190 = vmatpush.bf16.msra.mxu0 0
    %191 = vmatpush.bf16.msra.mxu0 0
    %192 = vmatpush.bf16.msra.mxu0 0
    %193 = vmatpush.bf16.msra.mxu0 0
    %194 = vmatpush.bf16.msra.mxu0 %v185
    %195 = vmatmul.bf16.gmra.mxu0 %v181
    %v196 = vpop.f32.mrf.mxu0
    %v197 = vadd.f32 0.0, %v196
    %v198 = vpop.f32.mrf.mxu0
    %199 = vdwg.mxu0
    %v200 = vpack.c.bf16 %v197, %v197
    %vm201 = vcmask 60416
    %202 = vst.msk [vmem:[#allocation3] sm:$0xf] %vm201, %v200
    %v203 = vld [vmem:[#allocation2] sm:$0xf]
    %v205 = vunpack.c.l.b16 %v203
    %v206 = vpack.c.b16 %v205, %v205
    %207 = vrot.lane.b32.xlu0 %v206, 120
    %v208 = vpop.permute.xlu0 %207
    %209 = vrot.lane.b32.xlu0 %v206, 88
    %v210 = vpop.permute.xlu0 %209
    %v212 = vsel %vm145, %v208, 0
    %v215 = vsel %vm145, %v210, 0
    %217 = vmatpush.bf16.xpose.msra.mxu0 0
    %218 = vmatpush.bf16.xpose.msra.mxu0 0
    %219 = vmatpush.bf16.xpose.msra.mxu0 0
    %220 = vmatpush.bf16.xpose.msra.mxu0 0
    %221 = vmatpush.bf16.xpose.msra.mxu0 0
    %222 = vmatpush.bf16.xpose.msra.mxu0 0
    %223 = vmatpush.bf16.xpose.msra.mxu0 0
    %224 = vmatpush.bf16.xpose.msra.mxu0 %v215
    %225 = vmatmul.bf16.gmra.mxu0 %v212
    %v226 = vpop.f32.mrf.mxu0
    %v227 = vadd.f32 0.0, %v226
    %v228 = vpop.f32.mrf.mxu0
    %229 = vdwg.mxu0
    %v230 = vmul.f32 %v227, 0.35355338
    %v231 = vsel %vm145, %v230, -inf
    %232 = vmax.xlane.f32.xlu0 %v231
    %v233 = vpop.xlane.xlu0 %232
    %v234 = vsub.f32 %v230, %v233
    %v235 = vmul.f32 %v234, 1.442695
    %v236 = vpow.pop %v235
    %v237 = vsel %vm145, %v236, 0.0
    %238 = vadd.xlane.f32.xlu0 %v237
    %v239 = vpop.xlane.xlu0 %238
    %v240 = vrcp.pop %v239
    %v241 = vmul.f32 %v236, %v240
    %v242 = vpack.c.bf16 %v241, %v241
    %243 = vrot.lane.b32.xlu0 %v206, 56
    %v244 = vpop.permute.xlu0 %243
    %v246 = vsel %vm145, %v242, 0
    %v249 = vsel %vm183, %v244, 0
    %251 = vmatpush.bf16.msra.mxu0 0
    %252 = vmatpush.bf16.msra.mxu0 0
    %253 = vmatpush.bf16.msra.mxu0 0
    %254 = vmatpush.bf16.msra.mxu0 0
    %255 = vmatpush.bf16.msra.mxu0 0
    %256 = vmatpush.bf16.msra.mxu0 0
    %257 = vmatpush.bf16.msra.mxu0 0
    %258 = vmatpush.bf16.msra.mxu0 %v249
    %259 = vmatmul.bf16.gmra.mxu0 %v246
    %v260 = vpop.f32.mrf.mxu0
    %v261 = vadd.f32 0.0, %v260
    %v262 = vpop.f32.mrf.mxu0
    %263 = vdwg.mxu0
    %v264 = vpack.c.bf16 %v261, %v261
    %266 = vrot.lane.b32.xlu0 %v264, 8
    %v267 = vpop.permute.xlu0 %266
    %vm269 = vcmask 126016
    %270 = vst.msk [vmem:[#allocation3] sm:$0xf] %vm269, %v267
    %v271 = vld [vmem:[#allocation2] sm:$0xf]
    %v273 = vunpack.c.l.b16 %v271
    %v274 = vpack.c.b16 %v273, %v273
    %275 = vrot.lane.b32.xlu0 %v274, 112
    %v276 = vpop.permute.xlu0 %275
    %277 = vrot.lane.b32.xlu0 %v274, 80
    %v278 = vpop.permute.xlu0 %277
    %v280 = vsel %vm145, %v276, 0
    %v283 = vsel %vm145, %v278, 0
    %285 = vmatpush.bf16.xpose.msra.mxu0 0
    %286 = vmatpush.bf16.xpose.msra.mxu0 0
    %287 = vmatpush.bf16.xpose.msra.mxu0 0
    %288 = vmatpush.bf16.xpose.msra.mxu0 0
    %289 = vmatpush.bf16.xpose.msra.mxu0 0
    %290 = vmatpush.bf16.xpose.msra.mxu0 0
    %291 = vmatpush.bf16.xpose.msra.mxu0 0
    %292 = vmatpush.bf16.xpose.msra.mxu0 %v283
    %293 = vmatmul.bf16.gmra.mxu0 %v280
    %v294 = vpop.f32.mrf.mxu0
    %v295 = vadd.f32 0.0, %v294
    %v296 = vpop.f32.mrf.mxu0
    %297 = vdwg.mxu0
    %v298 = vmul.f32 %v295, 0.35355338
    %v299 = vsel %vm145, %v298, -inf
    %300 = vmax.xlane.f32.xlu0 %v299
    %v301 = vpop.xlane.xlu0 %300
    %v302 = vsub.f32 %v298, %v301
    %v303 = vmul.f32 %v302, 1.442695
    %v304 = vpow.pop %v303
    %v305 = vsel %vm145, %v304, 0.0
    %306 = vadd.xlane.f32.xlu0 %v305
    %v307 = vpop.xlane.xlu0 %306
    %v308 = vrcp.pop %v307
    %v309 = vmul.f32 %v304, %v308
    %v310 = vpack.c.bf16 %v309, %v309
    %311 = vrot.lane.b32.xlu0 %v274, 48
    %v312 = vpop.permute.xlu0 %311
    %v314 = vsel %vm145, %v310, 0
    %v317 = vsel %vm183, %v312, 0
    %319 = vmatpush.bf16.msra.mxu0 0
    %320 = vmatpush.bf16.msra.mxu0 0
    %321 = vmatpush.bf16.msra.mxu0 0
    %322 = vmatpush.bf16.msra.mxu0 0
    %323 = vmatpush.bf16.msra.mxu0 0
    %324 = vmatpush.bf16.msra.mxu0 0
    %325 = vmatpush.bf16.msra.mxu0 0
    %326 = vmatpush.bf16.msra.mxu0 %v317
    %327 = vmatmul.bf16.gmra.mxu0 %v314
    %v328 = vpop.f32.mrf.mxu0
    %v329 = vadd.f32 0.0, %v328
    %v330 = vpop.f32.mrf.mxu0
    %331 = vdwg.mxu0
    %v332 = vpack.c.bf16 %v329, %v329
    %334 = vrot.lane.b32.xlu0 %v332, 16
    %v335 = vpop.permute.xlu0 %334
    %vm337 = vcmask 191616
    %338 = vst.msk [vmem:[#allocation3] sm:$0xf] %vm337, %v335
    %v339 = vld [vmem:[#allocation2] sm:$0xf]
    %v341 = vunpack.c.l.b16 %v339
    %v342 = vpack.c.b16 %v341, %v341
    %343 = vrot.lane.b32.xlu0 %v342, 104
    %v344 = vpop.permute.xlu0 %343
    %345 = vrot.lane.b32.xlu0 %v342, 72
    %v346 = vpop.permute.xlu0 %345
    %v348 = vsel %vm145, %v344, 0
    %v351 = vsel %vm145, %v346, 0
    %353 = vmatpush.bf16.xpose.msra.mxu0 0
    %354 = vmatpush.bf16.xpose.msra.mxu0 0
    %355 = vmatpush.bf16.xpose.msra.mxu0 0
    %356 = vmatpush.bf16.xpose.msra.mxu0 0
    %357 = vmatpush.bf16.xpose.msra.mxu0 0
    %358 = vmatpush.bf16.xpose.msra.mxu0 0
    %359 = vmatpush.bf16.xpose.msra.mxu0 0
    %360 = vmatpush.bf16.xpose.msra.mxu0 %v351
    %361 = vmatmul.bf16.gmra.mxu0 %v348
    %v362 = vpop.f32.mrf.mxu0
    %v363 = vadd.f32 0.0, %v362
    %v364 = vpop.f32.mrf.mxu0
    %365 = vdwg.mxu0
    %v366 = vmul.f32 %v363, 0.35355338
    %v367 = vsel %vm145, %v366, -inf
    %368 = vmax.xlane.f32.xlu0 %v367
    %v369 = vpop.xlane.xlu0 %368
    %v370 = vsub.f32 %v366, %v369
    %v371 = vmul.f32 %v370, 1.442695
    %v372 = vpow.pop %v371
    %v373 = vsel %vm145, %v372, 0.0
    %374 = vadd.xlane.f32.xlu0 %v373
    %v375 = vpop.xlane.xlu0 %374
    %v376 = vrcp.pop %v375
    %v377 = vmul.f32 %v372, %v376
    %v378 = vpack.c.bf16 %v377, %v377
    %379 = vrot.lane.b32.xlu0 %v342, 40
    %v380 = vpop.permute.xlu0 %379
    %v382 = vsel %vm145, %v378, 0
    %v385 = vsel %vm183, %v380, 0
    %387 = vmatpush.bf16.msra.mxu0 0
    %388 = vmatpush.bf16.msra.mxu0 0
    %389 = vmatpush.bf16.msra.mxu0 0
    %390 = vmatpush.bf16.msra.mxu0 0
    %391 = vmatpush.bf16.msra.mxu0 0
    %392 = vmatpush.bf16.msra.mxu0 0
    %393 = vmatpush.bf16.msra.mxu0 0
    %394 = vmatpush.bf16.msra.mxu0 %v385
    %395 = vmatmul.bf16.gmra.mxu0 %v382
    %v396 = vpop.f32.mrf.mxu0
    %v397 = vadd.f32 0.0, %v396
    %v398 = vpop.f32.mrf.mxu0
    %399 = vdwg.mxu0
    %v400 = vpack.c.bf16 %v397, %v397
    %402 = vrot.lane.b32.xlu0 %v400, 24
    %v403 = vpop.permute.xlu0 %402
    %vm405 = vcmask 257216
    %406 = vst.msk [vmem:[#allocation3] sm:$0xf] %vm405, %v403
    %v407 = vld [vmem:[#allocation2 + $0x4] sm:$0xf]
    %v409 = vunpack.c.l.b16 %v407
    %v410 = vpack.c.b16 %v409, %v409
    %411 = vrot.lane.b32.xlu0 %v410, 96
    %v412 = vpop.permute.xlu0 %411
    %v414 = vsel %vm145, %v407, 0
    %v417 = vsel %vm145, %v412, 0
    %419 = vmatpush.bf16.xpose.msra.mxu0 0
    %420 = vmatpush.bf16.xpose.msra.mxu0 0
    %421 = vmatpush.bf16.xpose.msra.mxu0 0
    %422 = vmatpush.bf16.xpose.msra.mxu0 0
    %423 = vmatpush.bf16.xpose.msra.mxu0 0
    %424 = vmatpush.bf16.xpose.msra.mxu0 0
    %425 = vmatpush.bf16.xpose.msra.mxu0 0
    %426 = vmatpush.bf16.xpose.msra.mxu0 %v417
    %427 = vmatmul.bf16.gmra.mxu0 %v414
    %v428 = vpop.f32.mrf.mxu0
    %v429 = vadd.f32 0.0, %v428
    %v430 = vpop.f32.mrf.mxu0
    %431 = vdwg.mxu0
    %v432 = vmul.f32 %v429, 0.35355338
    %v433 = vsel %vm145, %v432, -inf
    %434 = vmax.xlane.f32.xlu0 %v433
    %v435 = vpop.xlane.xlu0 %434
    %v436 = vsub.f32 %v432, %v435
    %v437 = vmul.f32 %v436, 1.442695
    %v438 = vpow.pop %v437
    %v439 = vsel %vm145, %v438, 0.0
    %440 = vadd.xlane.f32.xlu0 %v439
    %v441 = vpop.xlane.xlu0 %440
    %v442 = vrcp.pop %v441
    %v443 = vmul.f32 %v438, %v442
    %v444 = vpack.c.bf16 %v443, %v443
    %445 = vrot.lane.b32.xlu0 %v410, 64
    %v446 = vpop.permute.xlu0 %445
    %v448 = vsel %vm145, %v444, 0
    %v451 = vsel %vm183, %v446, 0
    %453 = vmatpush.bf16.msra.mxu0 0
    %454 = vmatpush.bf16.msra.mxu0 0
    %455 = vmatpush.bf16.msra.mxu0 0
    %456 = vmatpush.bf16.msra.mxu0 0
    %457 = vmatpush.bf16.msra.mxu0 0
    %458 = vmatpush.bf16.msra.mxu0 0
    %459 = vmatpush.bf16.msra.mxu0 0
    %460 = vmatpush.bf16.msra.mxu0 %v451
    %461 = vmatmul.bf16.gmra.mxu0 %v448
    %v462 = vpop.f32.mrf.mxu0
    %v463 = vadd.f32 0.0, %v462
    %v464 = vpop.f32.mrf.mxu0
    %465 = vdwg.mxu0
    %v466 = vpack.c.bf16 %v463, %v463
    %467 = vst.msk [vmem:[#allocation3 + $0x4] sm:$0xf] %vm201, %v466
    %v468 = vld [vmem:[#allocation2 + $0x4] sm:$0xf]
    %v470 = vunpack.c.l.b16 %v468
    %v471 = vpack.c.b16 %v470, %v470
    %472 = vrot.lane.b32.xlu0 %v471, 120
    %v473 = vpop.permute.xlu0 %472
    %474 = vrot.lane.b32.xlu0 %v471, 88
    %v475 = vpop.permute.xlu0 %474
    %v477 = vsel %vm145, %v473, 0
    %v480 = vsel %vm145, %v475, 0
    %482 = vmatpush.bf16.xpose.msra.mxu0 0
    %483 = vmatpush.bf16.xpose.msra.mxu0 0
    %484 = vmatpush.bf16.xpose.msra.mxu0 0
    %485 = vmatpush.bf16.xpose.msra.mxu0 0
    %486 = vmatpush.bf16.xpose.msra.mxu0 0
    %487 = vmatpush.bf16.xpose.msra.mxu0 0
    %488 = vmatpush.bf16.xpose.msra.mxu0 0
    %489 = vmatpush.bf16.xpose.msra.mxu0 %v480
    %490 = vmatmul.bf16.gmra.mxu0 %v477
    %v491 = vpop.f32.mrf.mxu0
    %v492 = vadd.f32 0.0, %v491
    %v493 = vpop.f32.mrf.mxu0
    %494 = vdwg.mxu0
    %v495 = vmul.f32 %v492, 0.35355338
    %v496 = vsel %vm145, %v495, -inf
    %497 = vmax.xlane.f32.xlu0 %v496
    %v498 = vpop.xlane.xlu0 %497
    %v499 = vsub.f32 %v495, %v498
    %v500 = vmul.f32 %v499, 1.442695
    %v501 = vpow.pop %v500
    %v502 = vsel %vm145, %v501, 0.0
    %503 = vadd.xlane.f32.xlu0 %v502
    %v504 = vpop.xlane.xlu0 %503
    %v505 = vrcp.pop %v504
    %v506 = vmul.f32 %v501, %v505
    %v507 = vpack.c.bf16 %v506, %v506
    %508 = vrot.lane.b32.xlu0 %v471, 56
    %v509 = vpop.permute.xlu0 %508
    %v511 = vsel %vm145, %v507, 0
    %v514 = vsel %vm183, %v509, 0
    %516 = vmatpush.bf16.msra.mxu0 0
    %517 = vmatpush.bf16.msra.mxu0 0
    %518 = vmatpush.bf16.msra.mxu0 0
    %519 = vmatpush.bf16.msra.mxu0 0
    %520 = vmatpush.bf16.msra.mxu0 0
    %521 = vmatpush.bf16.msra.mxu0 0
    %522 = vmatpush.bf16.msra.mxu0 0
    %523 = vmatpush.bf16.msra.mxu0 %v514
    %524 = vmatmul.bf16.gmra.mxu0 %v511
    %v525 = vpop.f32.mrf.mxu0
    %v526 = vadd.f32 0.0, %v525
    %v527 = vpop.f32.mrf.mxu0
    %528 = vdwg.mxu0
    %v529 = vpack.c.bf16 %v526, %v526
    %531 = vrot.lane.b32.xlu0 %v529, 8
    %v532 = vpop.permute.xlu0 %531
    %534 = vst.msk [vmem:[#allocation3 + $0x4] sm:$0xf] %vm269, %v532
    %v535 = vld [vmem:[#allocation2 + $0x4] sm:$0xf]
    %v537 = vunpack.c.l.b16 %v535
    %v538 = vpack.c.b16 %v537, %v537
    %539 = vrot.lane.b32.xlu0 %v538, 112
    %v540 = vpop.permute.xlu0 %539
    %541 = vrot.lane.b32.xlu0 %v538, 80
    %v542 = vpop.permute.xlu0 %541
    %v544 = vsel %vm145, %v540, 0
    %v547 = vsel %vm145, %v542, 0
    %549 = vmatpush.bf16.xpose.msra.mxu0 0
    %550 = vmatpush.bf16.xpose.msra.mxu0 0
    %551 = vmatpush.bf16.xpose.msra.mxu0 0
    %552 = vmatpush.bf16.xpose.msra.mxu0 0
    %553 = vmatpush.bf16.xpose.msra.mxu0 0
    %554 = vmatpush.bf16.xpose.msra.mxu0 0
    %555 = vmatpush.bf16.xpose.msra.mxu0 0
    %556 = vmatpush.bf16.xpose.msra.mxu0 %v547
    %557 = vmatmul.bf16.gmra.mxu0 %v544
    %v558 = vpop.f32.mrf.mxu0
    %v559 = vadd.f32 0.0, %v558
    %v560 = vpop.f32.mrf.mxu0
    %561 = vdwg.mxu0
    %v562 = vmul.f32 %v559, 0.35355338
    %v563 = vsel %vm145, %v562, -inf
    %564 = vmax.xlane.f32.xlu0 %v563
    %v565 = vpop.xlane.xlu0 %564
    %v566 = vsub.f32 %v562, %v565
    %v567 = vmul.f32 %v566, 1.442695
    %v568 = vpow.pop %v567
    %v569 = vsel %vm145, %v568, 0.0
    %570 = vadd.xlane.f32.xlu0 %v569
    %v571 = vpop.xlane.xlu0 %570
    %v572 = vrcp.pop %v571
    %v573 = vmul.f32 %v568, %v572
    %v574 = vpack.c.bf16 %v573, %v573
    %575 = vrot.lane.b32.xlu0 %v538, 48
    %v576 = vpop.permute.xlu0 %575
    %v578 = vsel %vm145, %v574, 0
    %v581 = vsel %vm183, %v576, 0
    %583 = vmatpush.bf16.msra.mxu0 0
    %584 = vmatpush.bf16.msra.mxu0 0
    %585 = vmatpush.bf16.msra.mxu0 0
    %586 = vmatpush.bf16.msra.mxu0 0
    %587 = vmatpush.bf16.msra.mxu0 0
    %588 = vmatpush.bf16.msra.mxu0 0
    %589 = vmatpush.bf16.msra.mxu0 0
    %590 = vmatpush.bf16.msra.mxu0 %v581
    %591 = vmatmul.bf16.gmra.mxu0 %v578
    %v592 = vpop.f32.mrf.mxu0
    %v593 = vadd.f32 0.0, %v592
    %v594 = vpop.f32.mrf.mxu0
    %595 = vdwg.mxu0
    %v596 = vpack.c.bf16 %v593, %v593
    %598 = vrot.lane.b32.xlu0 %v596, 16
    %v599 = vpop.permute.xlu0 %598
    %601 = vst.msk [vmem:[#allocation3 + $0x4] sm:$0xf] %vm337, %v599
    %v602 = vld [vmem:[#allocation2 + $0x4] sm:$0xf]
    %v604 = vunpack.c.l.b16 %v602
    %v605 = vpack.c.b16 %v604, %v604
    %606 = vrot.lane.b32.xlu0 %v605, 104
    %v607 = vpop.permute.xlu0 %606
    %608 = vrot.lane.b32.xlu0 %v605, 72
    %v609 = vpop.permute.xlu0 %608
    %v611 = vsel %vm145, %v607, 0
    %v614 = vsel %vm145, %v609, 0
    %616 = vmatpush.bf16.xpose.msra.mxu0 0
    %617 = vmatpush.bf16.xpose.msra.mxu0 0
    %618 = vmatpush.bf16.xpose.msra.mxu0 0
    %619 = vmatpush.bf16.xpose.msra.mxu0 0
    %620 = vmatpush.bf16.xpose.msra.mxu0 0
    %621 = vmatpush.bf16.xpose.msra.mxu0 0
    %622 = vmatpush.bf16.xpose.msra.mxu0 0
    %623 = vmatpush.bf16.xpose.msra.mxu0 %v614
    %624 = vmatmul.bf16.gmra.mxu0 %v611
    %v625 = vpop.f32.mrf.mxu0
    %v626 = vadd.f32 0.0, %v625
    %v627 = vpop.f32.mrf.mxu0
    %628 = vdwg.mxu0
    %v629 = vmul.f32 %v626, 0.35355338
    %v630 = vsel %vm145, %v629, -inf
    %631 = vmax.xlane.f32.xlu0 %v630
    %v632 = vpop.xlane.xlu0 %631
    %v633 = vsub.f32 %v629, %v632
    %v634 = vmul.f32 %v633, 1.442695
    %v635 = vpow.pop %v634
    %v636 = vsel %vm145, %v635, 0.0
    %637 = vadd.xlane.f32.xlu0 %v636
    %v638 = vpop.xlane.xlu0 %637
    %v639 = vrcp.pop %v638
    %v640 = vmul.f32 %v635, %v639
    %v641 = vpack.c.bf16 %v640, %v640
    %642 = vrot.lane.b32.xlu0 %v605, 40
    %v643 = vpop.permute.xlu0 %642
    %v645 = vsel %vm145, %v641, 0
    %v648 = vsel %vm183, %v643, 0
    %650 = vmatpush.bf16.msra.mxu0 0
    %651 = vmatpush.bf16.msra.mxu0 0
    %652 = vmatpush.bf16.msra.mxu0 0
    %653 = vmatpush.bf16.msra.mxu0 0
    %654 = vmatpush.bf16.msra.mxu0 0
    %655 = vmatpush.bf16.msra.mxu0 0
    %656 = vmatpush.bf16.msra.mxu0 0
    %657 = vmatpush.bf16.msra.mxu0 %v648
    %658 = vmatmul.bf16.gmra.mxu0 %v645
    %v659 = vpop.f32.mrf.mxu0
    %v660 = vadd.f32 0.0, %v659
    %v661 = vpop.f32.mrf.mxu0
    %662 = vdwg.mxu0
    %v663 = vpack.c.bf16 %v660, %v660
    %665 = vrot.lane.b32.xlu0 %v663, 24
    %v666 = vpop.permute.xlu0 %665
    %668 = vst.msk [vmem:[#allocation3 + $0x4] sm:$0xf] %vm405, %v666
    %v669 = vld [vmem:[#allocation2 + $0x8] sm:$0xf]
    %v671 = vunpack.c.l.b16 %v669
    %v672 = vpack.c.b16 %v671, %v671
    %673 = vrot.lane.b32.xlu0 %v672, 96
    %v674 = vpop.permute.xlu0 %673
    %v676 = vsel %vm145, %v669, 0
    %v679 = vsel %vm145, %v674, 0
    %681 = vmatpush.bf16.xpose.msra.mxu0 0
    %682 = vmatpush.bf16.xpose.msra.mxu0 0
    %683 = vmatpush.bf16.xpose.msra.mxu0 0
    %684 = vmatpush.bf16.xpose.msra.mxu0 0
    %685 = vmatpush.bf16.xpose.msra.mxu0 0
    %686 = vmatpush.bf16.xpose.msra.mxu0 0
    %687 = vmatpush.bf16.xpose.msra.mxu0 0
    %688 = vmatpush.bf16.xpose.msra.mxu0 %v679
    %689 = vmatmul.bf16.gmra.mxu0 %v676
    %v690 = vpop.f32.mrf.mxu0
    %v691 = vadd.f32 0.0, %v690
    %v692 = vpop.f32.mrf.mxu0
    %693 = vdwg.mxu0
    %v694 = vmul.f32 %v691, 0.35355338
    %v695 = vsel %vm145, %v694, -inf
    %696 = vmax.xlane.f32.xlu0 %v695
    %v697 = vpop.xlane.xlu0 %696
    %v698 = vsub.f32 %v694, %v697
    %v699 = vmul.f32 %v698, 1.442695
    %v700 = vpow.pop %v699
    %v701 = vsel %vm145, %v700, 0.0
    %702 = vadd.xlane.f32.xlu0 %v701
    %v703 = vpop.xlane.xlu0 %702
    %v704 = vrcp.pop %v703
    %v705 = vmul.f32 %v700, %v704
    %v706 = vpack.c.bf16 %v705, %v705
    %707 = vrot.lane.b32.xlu0 %v672, 64
    %v708 = vpop.permute.xlu0 %707
    %v710 = vsel %vm145, %v706, 0
    %v713 = vsel %vm183, %v708, 0
    %715 = vmatpush.bf16.msra.mxu0 0
    %716 = vmatpush.bf16.msra.mxu0 0
    %717 = vmatpush.bf16.msra.mxu0 0
    %718 = vmatpush.bf16.msra.mxu0 0
    %719 = vmatpush.bf16.msra.mxu0 0
    %720 = vmatpush.bf16.msra.mxu0 0
    %721 = vmatpush.bf16.msra.mxu0 0
    %722 = vmatpush.bf16.msra.mxu0 %v713
    %723 = vmatmul.bf16.gmra.mxu0 %v710
    %v724 = vpop.f32.mrf.mxu0
    %v725 = vadd.f32 0.0, %v724
    %v726 = vpop.f32.mrf.mxu0
    %727 = vdwg.mxu0
    %v728 = vpack.c.bf16 %v725, %v725
    %729 = vst.msk [vmem:[#allocation3 + $0x8] sm:$0xf] %vm201, %v728
    %v730 = vld [vmem:[#allocation2 + $0x8] sm:$0xf]
    %v732 = vunpack.c.l.b16 %v730
    %v733 = vpack.c.b16 %v732, %v732
    %734 = vrot.lane.b32.xlu0 %v733, 120
    %v735 = vpop.permute.xlu0 %734
    %736 = vrot.lane.b32.xlu0 %v733, 88
    %v737 = vpop.permute.xlu0 %736
    %v739 = vsel %vm145, %v735, 0
    %v742 = vsel %vm145, %v737, 0
    %744 = vmatpush.bf16.xpose.msra.mxu0 0
    %745 = vmatpush.bf16.xpose.msra.mxu0 0
    %746 = vmatpush.bf16.xpose.msra.mxu0 0
    %747 = vmatpush.bf16.xpose.msra.mxu0 0
    %748 = vmatpush.bf16.xpose.msra.mxu0 0
    %749 = vmatpush.bf16.xpose.msra.mxu0 0
    %750 = vmatpush.bf16.xpose.msra.mxu0 0
    %751 = vmatpush.bf16.xpose.msra.mxu0 %v742
    %752 = vmatmul.bf16.gmra.mxu0 %v739
    %v753 = vpop.f32.mrf.mxu0
    %v754 = vadd.f32 0.0, %v753
    %v755 = vpop.f32.mrf.mxu0
    %756 = vdwg.mxu0
    %v757 = vmul.f32 %v754, 0.35355338
    %v758 = vsel %vm145, %v757, -inf
    %759 = vmax.xlane.f32.xlu0 %v758
    %v760 = vpop.xlane.xlu0 %759
    %v761 = vsub.f32 %v757, %v760
    %v762 = vmul.f32 %v761, 1.442695
    %v763 = vpow.pop %v762
    %v764 = vsel %vm145, %v763, 0.0
    %765 = vadd.xlane.f32.xlu0 %v764
    %v766 = vpop.xlane.xlu0 %765
    %v767 = vrcp.pop %v766
    %v768 = vmul.f32 %v763, %v767
    %v769 = vpack.c.bf16 %v768, %v768
    %770 = vrot.lane.b32.xlu0 %v733, 56
    %v771 = vpop.permute.xlu0 %770
    %v773 = vsel %vm145, %v769, 0
    %v776 = vsel %vm183, %v771, 0
    %778 = vmatpush.bf16.msra.mxu0 0
    %779 = vmatpush.bf16.msra.mxu0 0
    %780 = vmatpush.bf16.msra.mxu0 0
    %781 = vmatpush.bf16.msra.mxu0 0
    %782 = vmatpush.bf16.msra.mxu0 0
    %783 = vmatpush.bf16.msra.mxu0 0
    %784 = vmatpush.bf16.msra.mxu0 0
    %785 = vmatpush.bf16.msra.mxu0 %v776
    %786 = vmatmul.bf16.gmra.mxu0 %v773
    %v787 = vpop.f32.mrf.mxu0
    %v788 = vadd.f32 0.0, %v787
    %v789 = vpop.f32.mrf.mxu0
    %790 = vdwg.mxu0
    %v791 = vpack.c.bf16 %v788, %v788
    %793 = vrot.lane.b32.xlu0 %v791, 8
    %v794 = vpop.permute.xlu0 %793
    %796 = vst.msk [vmem:[#allocation3 + $0x8] sm:$0xf] %vm269, %v794
    %v797 = vld [vmem:[#allocation2 + $0x8] sm:$0xf]
    %v799 = vunpack.c.l.b16 %v797
    %v800 = vpack.c.b16 %v799, %v799
    %801 = vrot.lane.b32.xlu0 %v800, 112
    %v802 = vpop.permute.xlu0 %801
    %803 = vrot.lane.b32.xlu0 %v800, 80
    %v804 = vpop.permute.xlu0 %803
    %v806 = vsel %vm145, %v802, 0
    %v809 = vsel %vm145, %v804, 0
    %811 = vmatpush.bf16.xpose.msra.mxu0 0
    %812 = vmatpush.bf16.xpose.msra.mxu0 0
    %813 = vmatpush.bf16.xpose.msra.mxu0 0
    %814 = vmatpush.bf16.xpose.msra.mxu0 0
    %815 = vmatpush.bf16.xpose.msra.mxu0 0
    %816 = vmatpush.bf16.xpose.msra.mxu0 0
    %817 = vmatpush.bf16.xpose.msra.mxu0 0
    %818 = vmatpush.bf16.xpose.msra.mxu0 %v809
    %819 = vmatmul.bf16.gmra.mxu0 %v806
    %v820 = vpop.f32.mrf.mxu0
    %v821 = vadd.f32 0.0, %v820
    %v822 = vpop.f32.mrf.mxu0
    %823 = vdwg.mxu0
    %v824 = vmul.f32 %v821, 0.35355338
    %v825 = vsel %vm145, %v824, -inf
    %826 = vmax.xlane.f32.xlu0 %v825
    %v827 = vpop.xlane.xlu0 %826
    %v828 = vsub.f32 %v824, %v827
    %v829 = vmul.f32 %v828, 1.442695
    %v830 = vpow.pop %v829
    %v831 = vsel %vm145, %v830, 0.0
    %832 = vadd.xlane.f32.xlu0 %v831
    %v833 = vpop.xlane.xlu0 %832
    %v834 = vrcp.pop %v833
    %v835 = vmul.f32 %v830, %v834
    %v836 = vpack.c.bf16 %v835, %v835
    %837 = vrot.lane.b32.xlu0 %v800, 48
    %v838 = vpop.permute.xlu0 %837
    %v840 = vsel %vm145, %v836, 0
    %v843 = vsel %vm183, %v838, 0
    %845 = vmatpush.bf16.msra.mxu0 0
    %846 = vmatpush.bf16.msra.mxu0 0
    %847 = vmatpush.bf16.msra.mxu0 0
    %848 = vmatpush.bf16.msra.mxu0 0
    %849 = vmatpush.bf16.msra.mxu0 0
    %850 = vmatpush.bf16.msra.mxu0 0
    %851 = vmatpush.bf16.msra.mxu0 0
    %852 = vmatpush.bf16.msra.mxu0 %v843
    %853 = vmatmul.bf16.gmra.mxu0 %v840
    %v854 = vpop.f32.mrf.mxu0
    %v855 = vadd.f32 0.0, %v854
    %v856 = vpop.f32.mrf.mxu0
    %857 = vdwg.mxu0
    %v858 = vpack.c.bf16 %v855, %v855
    %860 = vrot.lane.b32.xlu0 %v858, 16
    %v861 = vpop.permute.xlu0 %860
    %863 = vst.msk [vmem:[#allocation3 + $0x8] sm:$0xf] %vm337, %v861
    %v864 = vld [vmem:[#allocation2 + $0x8] sm:$0xf]
    %v866 = vunpack.c.l.b16 %v864
    %v867 = vpack.c.b16 %v866, %v866
    %868 = vrot.lane.b32.xlu0 %v867, 104
    %v869 = vpop.permute.xlu0 %868
    %870 = vrot.lane.b32.xlu0 %v867, 72
    %v871 = vpop.permute.xlu0 %870
    %v873 = vsel %vm145, %v869, 0
    %v876 = vsel %vm145, %v871, 0
    %878 = vmatpush.bf16.xpose.msra.mxu0 0
    %879 = vmatpush.bf16.xpose.msra.mxu0 0
    %880 = vmatpush.bf16.xpose.msra.mxu0 0
    %881 = vmatpush.bf16.xpose.msra.mxu0 0
    %882 = vmatpush.bf16.xpose.msra.mxu0 0
    %883 = vmatpush.bf16.xpose.msra.mxu0 0
    %884 = vmatpush.bf16.xpose.msra.mxu0 0
    %885 = vmatpush.bf16.xpose.msra.mxu0 %v876
    %886 = vmatmul.bf16.gmra.mxu0 %v873
    %v887 = vpop.f32.mrf.mxu0
    %v888 = vadd.f32 0.0, %v887
    %v889 = vpop.f32.mrf.mxu0
    %890 = vdwg.mxu0
    %v891 = vmul.f32 %v888, 0.35355338
    %v892 = vsel %vm145, %v891, -inf
    %893 = vmax.xlane.f32.xlu0 %v892
    %v894 = vpop.xlane.xlu0 %893
    %v895 = vsub.f32 %v891, %v894
    %v896 = vmul.f32 %v895, 1.442695
    %v897 = vpow.pop %v896
    %v898 = vsel %vm145, %v897, 0.0
    %899 = vadd.xlane.f32.xlu0 %v898
    %v900 = vpop.xlane.xlu0 %899
    %v901 = vrcp.pop %v900
    %v902 = vmul.f32 %v897, %v901
    %v903 = vpack.c.bf16 %v902, %v902
    %904 = vrot.lane.b32.xlu0 %v867, 40
    %v905 = vpop.permute.xlu0 %904
    %v907 = vsel %vm145, %v903, 0
    %v910 = vsel %vm183, %v905, 0
    %912 = vmatpush.bf16.msra.mxu0 0
    %913 = vmatpush.bf16.msra.mxu0 0
    %914 = vmatpush.bf16.msra.mxu0 0
    %915 = vmatpush.bf16.msra.mxu0 0
    %916 = vmatpush.bf16.msra.mxu0 0
    %917 = vmatpush.bf16.msra.mxu0 0
    %918 = vmatpush.bf16.msra.mxu0 0
    %919 = vmatpush.bf16.msra.mxu0 %v910
    %920 = vmatmul.bf16.gmra.mxu0 %v907
    %v921 = vpop.f32.mrf.mxu0
    %v922 = vadd.f32 0.0, %v921
    %v923 = vpop.f32.mrf.mxu0
    %924 = vdwg.mxu0
    %v925 = vpack.c.bf16 %v922, %v922
    %927 = vrot.lane.b32.xlu0 %v925, 24
    %v928 = vpop.permute.xlu0 %927
    %930 = vst.msk [vmem:[#allocation3 + $0x8] sm:$0xf] %vm405, %v928
    %v931 = vld [vmem:[#allocation2 + $0xc] sm:$0xf]
    %v933 = vunpack.c.l.b16 %v931
    %v934 = vpack.c.b16 %v933, %v933
    %935 = vrot.lane.b32.xlu0 %v934, 96
    %v936 = vpop.permute.xlu0 %935
    %v938 = vsel %vm145, %v931, 0
    %v941 = vsel %vm145, %v936, 0
    %943 = vmatpush.bf16.xpose.msra.mxu0 0
    %944 = vmatpush.bf16.xpose.msra.mxu0 0
    %945 = vmatpush.bf16.xpose.msra.mxu0 0
    %946 = vmatpush.bf16.xpose.msra.mxu0 0
    %947 = vmatpush.bf16.xpose.msra.mxu0 0
    %948 = vmatpush.bf16.xpose.msra.mxu0 0
    %949 = vmatpush.bf16.xpose.msra.mxu0 0
    %950 = vmatpush.bf16.xpose.msra.mxu0 %v941
    %951 = vmatmul.bf16.gmra.mxu0 %v938
    %v952 = vpop.f32.mrf.mxu0
    %v953 = vadd.f32 0.0, %v952
    %v954 = vpop.f32.mrf.mxu0
    %955 = vdwg.mxu0
    %v956 = vmul.f32 %v953, 0.35355338
    %v957 = vsel %vm145, %v956, -inf
    %958 = vmax.xlane.f32.xlu0 %v957
    %v959 = vpop.xlane.xlu0 %958
    %v960 = vsub.f32 %v956, %v959
    %v961 = vmul.f32 %v960, 1.442695
    %v962 = vpow.pop %v961
    %v963 = vsel %vm145, %v962, 0.0
    %964 = vadd.xlane.f32.xlu0 %v963
    %v965 = vpop.xlane.xlu0 %964
    %v966 = vrcp.pop %v965
    %v967 = vmul.f32 %v962, %v966
    %v968 = vpack.c.bf16 %v967, %v967
    %969 = vrot.lane.b32.xlu0 %v934, 64
    %v970 = vpop.permute.xlu0 %969
    %v972 = vsel %vm145, %v968, 0
    %v975 = vsel %vm183, %v970, 0
    %977 = vmatpush.bf16.msra.mxu0 0
    %978 = vmatpush.bf16.msra.mxu0 0
    %979 = vmatpush.bf16.msra.mxu0 0
    %980 = vmatpush.bf16.msra.mxu0 0
    %981 = vmatpush.bf16.msra.mxu0 0
    %982 = vmatpush.bf16.msra.mxu0 0
    %983 = vmatpush.bf16.msra.mxu0 0
    %984 = vmatpush.bf16.msra.mxu0 %v975
    %985 = vmatmul.bf16.gmra.mxu0 %v972
    %v986 = vpop.f32.mrf.mxu0
    %v987 = vadd.f32 0.0, %v986
    %v988 = vpop.f32.mrf.mxu0
    %989 = vdwg.mxu0
    %v990 = vpack.c.bf16 %v987, %v987
    %991 = vst.msk [vmem:[#allocation3 + $0xc] sm:$0xf] %vm201, %v990
    %v992 = vld [vmem:[#allocation2 + $0xc] sm:$0xf]
    %v994 = vunpack.c.l.b16 %v992
    %v995 = vpack.c.b16 %v994, %v994
    %996 = vrot.lane.b32.xlu0 %v995, 120
    %v997 = vpop.permute.xlu0 %996
    %998 = vrot.lane.b32.xlu0 %v995, 88
    %v999 = vpop.permute.xlu0 %998
    %v1001 = vsel %vm145, %v997, 0
    %v1004 = vsel %vm145, %v999, 0
    %1006 = vmatpush.bf16.xpose.msra.mxu0 0
    %1007 = vmatpush.bf16.xpose.msra.mxu0 0
    %1008 = vmatpush.bf16.xpose.msra.mxu0 0
    %1009 = vmatpush.bf16.xpose.msra.mxu0 0
    %1010 = vmatpush.bf16.xpose.msra.mxu0 0
    %1011 = vmatpush.bf16.xpose.msra.mxu0 0
    %1012 = vmatpush.bf16.xpose.msra.mxu0 0
    %1013 = vmatpush.bf16.xpose.msra.mxu0 %v1004
    %1014 = vmatmul.bf16.gmra.mxu0 %v1001
    %v1015 = vpop.f32.mrf.mxu0
    %v1016 = vadd.f32 0.0, %v1015
    %v1017 = vpop.f32.mrf.mxu0
    %1018 = vdwg.mxu0
    %v1019 = vmul.f32 %v1016, 0.35355338
    %v1020 = vsel %vm145, %v1019, -inf
    %1021 = vmax.xlane.f32.xlu0 %v1020
    %v1022 = vpop.xlane.xlu0 %1021
    %v1023 = vsub.f32 %v1019, %v1022
    %v1024 = vmul.f32 %v1023, 1.442695
    %v1025 = vpow.pop %v1024
    %v1026 = vsel %vm145, %v1025, 0.0
    %1027 = vadd.xlane.f32.xlu0 %v1026
    %v1028 = vpop.xlane.xlu0 %1027
    %v1029 = vrcp.pop %v1028
    %v1030 = vmul.f32 %v1025, %v1029
    %v1031 = vpack.c.bf16 %v1030, %v1030
    %1032 = vrot.lane.b32.xlu0 %v995, 56
    %v1033 = vpop.permute.xlu0 %1032
    %v1035 = vsel %vm145, %v1031, 0
    %v1038 = vsel %vm183, %v1033, 0
    %1040 = vmatpush.bf16.msra.mxu0 0
    %1041 = vmatpush.bf16.msra.mxu0 0
    %1042 = vmatpush.bf16.msra.mxu0 0
    %1043 = vmatpush.bf16.msra.mxu0 0
    %1044 = vmatpush.bf16.msra.mxu0 0
    %1045 = vmatpush.bf16.msra.mxu0 0
    %1046 = vmatpush.bf16.msra.mxu0 0
    %1047 = vmatpush.bf16.msra.mxu0 %v1038
    %1048 = vmatmul.bf16.gmra.mxu0 %v1035
    %v1049 = vpop.f32.mrf.mxu0
    %v1050 = vadd.f32 0.0, %v1049
    %v1051 = vpop.f32.mrf.mxu0
    %1052 = vdwg.mxu0
    %v1053 = vpack.c.bf16 %v1050, %v1050
    %1055 = vrot.lane.b32.xlu0 %v1053, 8
    %v1056 = vpop.permute.xlu0 %1055
    %1058 = vst.msk [vmem:[#allocation3 + $0xc] sm:$0xf] %vm269, %v1056
    %v1059 = vld [vmem:[#allocation2 + $0xc] sm:$0xf]
    %v1061 = vunpack.c.l.b16 %v1059
    %v1062 = vpack.c.b16 %v1061, %v1061
    %1063 = vrot.lane.b32.xlu0 %v1062, 112
    %v1064 = vpop.permute.xlu0 %1063
    %1065 = vrot.lane.b32.xlu0 %v1062, 80
    %v1066 = vpop.permute.xlu0 %1065
    %v1068 = vsel %vm145, %v1064, 0
    %v1071 = vsel %vm145, %v1066, 0
    %1073 = vmatpush.bf16.xpose.msra.mxu0 0
    %1074 = vmatpush.bf16.xpose.msra.mxu0 0
    %1075 = vmatpush.bf16.xpose.msra.mxu0 0
    %1076 = vmatpush.bf16.xpose.msra.mxu0 0
    %1077 = vmatpush.bf16.xpose.msra.mxu0 0
    %1078 = vmatpush.bf16.xpose.msra.mxu0 0
    %1079 = vmatpush.bf16.xpose.msra.mxu0 0
    %1080 = vmatpush.bf16.xpose.msra.mxu0 %v1071
    %1081 = vmatmul.bf16.gmra.mxu0 %v1068
    %v1082 = vpop.f32.mrf.mxu0
    %v1083 = vadd.f32 0.0, %v1082
    %v1084 = vpop.f32.mrf.mxu0
    %1085 = vdwg.mxu0
    %v1086 = vmul.f32 %v1083, 0.35355338
    %v1087 = vsel %vm145, %v1086, -inf
    %1088 = vmax.xlane.f32.xlu0 %v1087
    %v1089 = vpop.xlane.xlu0 %1088
    %v1090 = vsub.f32 %v1086, %v1089
    %v1091 = vmul.f32 %v1090, 1.442695
    %v1092 = vpow.pop %v1091
    %v1093 = vsel %vm145, %v1092, 0.0
    %1094 = vadd.xlane.f32.xlu0 %v1093
    %v1095 = vpop.xlane.xlu0 %1094
    %v1096 = vrcp.pop %v1095
    %v1097 = vmul.f32 %v1092, %v1096
    %v1098 = vpack.c.bf16 %v1097, %v1097
    %1099 = vrot.lane.b32.xlu0 %v1062, 48
    %v1100 = vpop.permute.xlu0 %1099
    %v1102 = vsel %vm145, %v1098, 0
    %v1105 = vsel %vm183, %v1100, 0
    %1107 = vmatpush.bf16.msra.mxu0 0
    %1108 = vmatpush.bf16.msra.mxu0 0
    %1109 = vmatpush.bf16.msra.mxu0 0
    %1110 = vmatpush.bf16.msra.mxu0 0
    %1111 = vmatpush.bf16.msra.mxu0 0
    %1112 = vmatpush.bf16.msra.mxu0 0
    %1113 = vmatpush.bf16.msra.mxu0 0
    %1114 = vmatpush.bf16.msra.mxu0 %v1105
    %1115 = vmatmul.bf16.gmra.mxu0 %v1102
    %v1116 = vpop.f32.mrf.mxu0
    %v1117 = vadd.f32 0.0, %v1116
    %v1118 = vpop.f32.mrf.mxu0
    %1119 = vdwg.mxu0
    %v1120 = vpack.c.bf16 %v1117, %v1117
    %1122 = vrot.lane.b32.xlu0 %v1120, 16
    %v1123 = vpop.permute.xlu0 %1122
    %1125 = vst.msk [vmem:[#allocation3 + $0xc] sm:$0xf] %vm337, %v1123
    %v1126 = vld [vmem:[#allocation2 + $0xc] sm:$0xf]
    %v1128 = vunpack.c.l.b16 %v1126
    %v1129 = vpack.c.b16 %v1128, %v1128
    %1130 = vrot.lane.b32.xlu0 %v1129, 104
    %v1131 = vpop.permute.xlu0 %1130
    %1132 = vrot.lane.b32.xlu0 %v1129, 72
    %v1133 = vpop.permute.xlu0 %1132
    %v1135 = vsel %vm145, %v1131, 0
    %v1138 = vsel %vm145, %v1133, 0
    %1140 = vmatpush.bf16.xpose.msra.mxu0 0
    %1141 = vmatpush.bf16.xpose.msra.mxu0 0
    %1142 = vmatpush.bf16.xpose.msra.mxu0 0
    %1143 = vmatpush.bf16.xpose.msra.mxu0 0
    %1144 = vmatpush.bf16.xpose.msra.mxu0 0
    %1145 = vmatpush.bf16.xpose.msra.mxu0 0
    %1146 = vmatpush.bf16.xpose.msra.mxu0 0
    %1147 = vmatpush.bf16.xpose.msra.mxu0 %v1138
    %1148 = vmatmul.bf16.gmra.mxu0 %v1135
    %v1149 = vpop.f32.mrf.mxu0
    %v1150 = vadd.f32 0.0, %v1149
    %v1151 = vpop.f32.mrf.mxu0
    %1152 = vdwg.mxu0
    %v1153 = vmul.f32 %v1150, 0.35355338
    %v1154 = vsel %vm145, %v1153, -inf
    %1155 = vmax.xlane.f32.xlu0 %v1154
    %v1156 = vpop.xlane.xlu0 %1155
    %v1157 = vsub.f32 %v1153, %v1156
    %v1158 = vmul.f32 %v1157, 1.442695
    %v1159 = vpow.pop %v1158
    %v1160 = vsel %vm145, %v1159, 0.0
    %1161 = vadd.xlane.f32.xlu0 %v1160
    %v1162 = vpop.xlane.xlu0 %1161
    %v1163 = vrcp.pop %v1162
    %v1164 = vmul.f32 %v1159, %v1163
    %v1165 = vpack.c.bf16 %v1164, %v1164
    %1166 = vrot.lane.b32.xlu0 %v1129, 40
    %v1167 = vpop.permute.xlu0 %1166
    %v1169 = vsel %vm145, %v1165, 0
    %v1172 = vsel %vm183, %v1167, 0
    %1174 = vmatpush.bf16.msra.mxu0 0
    %1175 = vmatpush.bf16.msra.mxu0 0
    %1176 = vmatpush.bf16.msra.mxu0 0
    %1177 = vmatpush.bf16.msra.mxu0 0
    %1178 = vmatpush.bf16.msra.mxu0 0
    %1179 = vmatpush.bf16.msra.mxu0 0
    %1180 = vmatpush.bf16.msra.mxu0 0
    %1181 = vmatpush.bf16.msra.mxu0 %v1172
    %1182 = vmatmul.bf16.gmra.mxu0 %v1169
    %v1183 = vpop.f32.mrf.mxu0
    %v1184 = vadd.f32 0.0, %v1183
    %v1185 = vpop.f32.mrf.mxu0
    %1186 = vdwg.mxu0
    %v1187 = vpack.c.bf16 %v1184, %v1184
    %1189 = vrot.lane.b32.xlu0 %v1187, 24
    %v1190 = vpop.permute.xlu0 %1189
    %1192 = vst.msk [vmem:[#allocation3 + $0xc] sm:$0xf] %vm405, %v1190
    %v1193 = vld [vmem:[#allocation3] sm:$0xf]
    %v1194 = vld [vmem:[#allocation3 + $0x4] sm:$0xf]
    %v1195 = vld [vmem:[#allocation3 + $0x8] sm:$0xf]
    %v1196 = vld [vmem:[#allocation3 + $0xc] sm:$0xf]
    %v1197 = vld [vmem:[#allocation4] sm:$0xf]
    %v1198 = vld [vmem:[#allocation4 + $0x4] sm:$0xf]
    %v1199 = vld [vmem:[#allocation4 + $0x8] sm:$0xf]
    %v1200 = vld [vmem:[#allocation4 + $0xc] sm:$0xf]
    %v1201 = vld [vmem:[%s4] sm:$0x1]
    %v1203 = vperm.slane %v1201, 0
    %v1209 = vunpack.c.l.b16 %v1193
    %v1210 = vunpack.c.l.b16 %v1194
    %v1211 = vunpack.c.l.b16 %v1195
    %v1212 = vunpack.c.l.b16 %v1196
    %v1213 = vpack.c.b16 %v1210, %v1209
    %v1214 = vpack.c.b16 %v1212, %v1211
    %v1219 = vunpack.c.l.b16 %v1197
    %v1220 = vunpack.c.l.b16 %v1198
    %v1221 = vunpack.c.l.b16 %v1199
    %v1222 = vunpack.c.l.b16 %v1200
    %v1223 = vpack.c.b16 %v1220, %v1219
    %v1224 = vpack.c.b16 %v1222, %v1221
    %v1228 = vsel %vm104, %v1213, 0
    %v1231 = vsel %vm104, %v1214, 0
    %1233 = vmatpush.bf16.msra.mxu0 0
    %1234 = vmatpush.bf16.msra.mxu0 0
    %1235 = vmatpush.bf16.msra.mxu0 0
    %1236 = vmatpush.bf16.msra.mxu0 0
    %1237 = vmatpush.bf16.msra.mxu0 0
    %1238 = vmatpush.bf16.msra.mxu0 0
    %1239 = vmatpush.bf16.msra.mxu0 %v1224
    %1240 = vmatpush.bf16.msra.mxu0 %v1223
    %1241 = vmatmul.bf16.gmra.mxu0 %v1228
    %v1242 = vpop.f32.mrf.mxu0
    %v1243 = vadd.f32 %v1203, %v1242
    %v1244 = vpop.f32.mrf.mxu0
    %v1245 = vadd.f32 %v1203, %v1244
    %1246 = vmatmul.bf16.gmra.mxu0 %v1231
    %v1247 = vpop.f32.mrf.mxu0
    %v1248 = vadd.f32 %v1203, %v1247
    %v1249 = vpop.f32.mrf.mxu0
    %v1250 = vadd.f32 %v1203, %v1249
    %1251 = vdwg.mxu0
    %v1252 = vadd.f32 %v1243, %v78
    %v1253 = vadd.f32 %v1245, %v79
    %v1254 = vadd.f32 %v1248, %v80
    %v1255 = vadd.f32 %v1250, %v81
    %v1256 = vsel %vm104, %v1252, 0.0
    %1257 = vadd.xlane.f32.xlu0 %v1256
    %v1258 = vpop.xlane.xlu0 %1257
    %v1259 = vsel %vm104, %v1253, 0.0
    %1260 = vadd.xlane.f32.xlu0 %v1259
    %v1261 = vpop.xlane.xlu0 %1260
    %v1262 = vsel %vm104, %v1254, 0.0
    %1263 = vadd.xlane.f32.xlu0 %v1262
    %v1264 = vpop.xlane.xlu0 %1263
    %v1265 = vsel %vm104, %v1255, 0.0
    %1266 = vadd.xlane.f32.xlu0 %v1265
    %v1267 = vpop.xlane.xlu0 %1266
    %v1268 = vrcp.pop 32.0
    %v1269 = vmul.f32 32.0, %v1268
    %v1270 = vsub.f32 1.0, %v1269
    %v1271 = vmul.f32 %v1268, %v1270
    %v1272 = vadd.f32 %v1268, %v1271
    %vm1273 = vweird.f32 %v1268
    %v1274 = vsel %vm1273, %v1268, %v1272
    %v1275 = vmul.f32 %v1258, %v1274
    %v1276 = vmul.f32 %v1261, %v1274
    %v1277 = vmul.f32 %v1264, %v1274
    %v1278 = vmul.f32 %v1267, %v1274
    %v1279 = vsub.f32 %v1252, %v1275
    %v1280 = vsub.f32 %v1253, %v1276
    %v1281 = vsub.f32 %v1254, %v1277
    %v1282 = vsub.f32 %v1255, %v1278
    %v1283 = vmul.f32 %v1279, %v1279
    %v1284 = vmul.f32 %v1280, %v1280
    %v1285 = vmul.f32 %v1281, %v1281
    %v1286 = vmul.f32 %v1282, %v1282
    %v1287 = vsel %vm104, %v1283, 0.0
    %1288 = vadd.xlane.f32.xlu0 %v1287
    %v1289 = vpop.xlane.xlu0 %1288
    %v1290 = vsel %vm104, %v1284, 0.0
    %1291 = vadd.xlane.f32.xlu0 %v1290
    %v1292 = vpop.xlane.xlu0 %1291
    %v1293 = vsel %vm104, %v1285, 0.0
    %1294 = vadd.xlane.f32.xlu0 %v1293
    %v1295 = vpop.xlane.xlu0 %1294
    %v1296 = vsel %vm104, %v1286, 0.0
    %1297 = vadd.xlane.f32.xlu0 %v1296
    %v1298 = vpop.xlane.xlu0 %1297
    %v1299 = vmul.f32 %v1289, %v1274
    %v1300 = vmul.f32 %v1292, %v1274
    %v1301 = vmul.f32 %v1295, %v1274
    %v1302 = vmul.f32 %v1298, %v1274
    %v1303 = vadd.f32 %v1299, 1e-05
    %v1304 = vadd.f32 %v1300, 1e-05
    %v1305 = vadd.f32 %v1301, 1e-05
    %v1306 = vadd.f32 %v1302, 1e-05
    %v1307 = vrsqrt.pop %v1303
    %v1308 = vmul.f32 %v1307, %v1303
    %v1309 = vmul.f32 %v1308, %v1307
    %v1310 = vmul.f32 0.5, %v1309
    %v1311 = vsub.f32 1.5, %v1310
    %v1312 = vmul.f32 %v1307, %v1311
    %vm1313 = vweird.f32 %v1303
    %vm1314 = vweird.f32 %v1307
    %vm1315 = vmor %vm1313, %vm1314
    %v1316 = vsel %vm1315, %v1307, %v1312
    %v1317 = vrsqrt.pop %v1304
    %v1318 = vmul.f32 %v1317, %v1304
    %v1319 = vmul.f32 %v1318, %v1317
    %v1320 = vmul.f32 0.5, %v1319
    %v1321 = vsub.f32 1.5, %v1320
    %v1322 = vmul.f32 %v1317, %v1321
    %vm1323 = vweird.f32 %v1304
    %vm1324 = vweird.f32 %v1317
    %vm1325 = vmor %vm1323, %vm1324
    %v1326 = vsel %vm1325, %v1317, %v1322
    %v1327 = vrsqrt.pop %v1305
    %v1328 = vmul.f32 %v1327, %v1305
    %v1329 = vmul.f32 %v1328, %v1327
    %v1330 = vmul.f32 0.5, %v1329
    %v1331 = vsub.f32 1.5, %v1330
    %v1332 = vmul.f32 %v1327, %v1331
    %vm1333 = vweird.f32 %v1305
    %vm1334 = vweird.f32 %v1327
    %vm1335 = vmor %vm1333, %vm1334
    %v1336 = vsel %vm1335, %v1327, %v1332
    %v1337 = vrsqrt.pop %v1306
    %v1338 = vmul.f32 %v1337, %v1306
    %v1339 = vmul.f32 %v1338, %v1337
    %v1340 = vmul.f32 0.5, %v1339
    %v1341 = vsub.f32 1.5, %v1340
    %v1342 = vmul.f32 %v1337, %v1341
    %vm1343 = vweird.f32 %v1306
    %vm1344 = vweird.f32 %v1337
    %vm1345 = vmor %vm1343, %vm1344
    %v1346 = vsel %vm1345, %v1337, %v1342
    %v1347 = vmul.f32 %v1279, %v1316
    %v1348 = vmul.f32 %v1280, %v1326
    %v1349 = vmul.f32 %v1281, %v1336
    %v1350 = vmul.f32 %v1282, %v1346
    %v1351 = vld [vmem:[%s5] sm:$0x1]
    %v1353 = vperm.slane %v1351, 0
    %v1355 = vmul.f32 %v1347, %v1353
    %v1356 = vmul.f32 %v1348, %v1353
    %v1357 = vmul.f32 %v1349, %v1353
    %v1358 = vmul.f32 %v1350, %v1353
    %v1359 = vld [vmem:[%s6] sm:$0x1]
    %v1361 = vperm.slane %v1359, 0
    %v1363 = vadd.f32 %v1355, %v1361
    %v1364 = vadd.f32 %v1356, %v1361
    %v1365 = vadd.f32 %v1357, %v1361
    %v1366 = vadd.f32 %v1358, %v1361
    %v1367 = vpack.c.bf16 %v1364, %v1363
    %v1368 = vpack.c.bf16 %v1366, %v1365
    %v1369 = vld [vmem:[#allocation7] sm:$0xf]
    %v1370 = vld [vmem:[#allocation7 + $0x4] sm:$0xf]
    %v1371 = vld [vmem:[#allocation7 + $0x8] sm:$0xf]
    %v1372 = vld [vmem:[#allocation7 + $0xc] sm:$0xf]
    %v1373 = vld [vmem:[%s8] sm:$0x1]
    %v1375 = vperm.slane %v1373, 0
    %v1381 = vunpack.c.l.b16 %v1369
    %v1382 = vunpack.c.l.b16 %v1370
    %v1383 = vunpack.c.l.b16 %v1371
    %v1384 = vunpack.c.l.b16 %v1372
    %v1385 = vpack.c.b16 %v1382, %v1381
    %v1386 = vpack.c.b16 %v1384, %v1383
    %v1390 = vsel %vm104, %v1367, 0
    %v1393 = vsel %vm104, %v1368, 0
    %1395 = vmatpush.bf16.msra.mxu0 0
    %1396 = vmatpush.bf16.msra.mxu0 0
    %1397 = vmatpush.bf16.msra.mxu0 0
    %1398 = vmatpush.bf16.msra.mxu0 0
    %1399 = vmatpush.bf16.msra.mxu0 0
    %1400 = vmatpush.bf16.msra.mxu0 0
    %1401 = vmatpush.bf16.msra.mxu0 %v1386
    %1402 = vmatpush.bf16.msra.mxu0 %v1385
    %1403 = vmatmul.bf16.gmra.mxu0 %v1390
    %v1404 = vpop.f32.mrf.mxu0
    %v1405 = vadd.f32 %v1375, %v1404
    %v1406 = vpop.f32.mrf.mxu0
    %v1407 = vadd.f32 %v1375, %v1406
    %1408 = vmatmul.bf16.gmra.mxu0 %v1393
    %v1409 = vpop.f32.mrf.mxu0
    %v1410 = vadd.f32 %v1375, %v1409
    %v1411 = vpop.f32.mrf.mxu0
    %v1412 = vadd.f32 %v1375, %v1411
    %1413 = vdwg.mxu0
    %v1414 = vmul.f32 %v1405, %v1405
    %v1415 = vmul.f32 %v1407, %v1407
    %v1416 = vmul.f32 %v1410, %v1410
    %v1417 = vmul.f32 %v1412, %v1412
    %v1418 = vmul.f32 %v1405, %v1414
    %v1419 = vmul.f32 %v1407, %v1415
    %v1420 = vmul.f32 %v1410, %v1416
    %v1421 = vmul.f32 %v1412, %v1417
    %v1422 = vmul.f32 %v1418, 0.044715
    %v1423 = vmul.f32 %v1419, 0.044715
    %v1424 = vmul.f32 %v1420, 0.044715
    %v1425 = vmul.f32 %v1421, 0.044715
    %v1426 = vadd.f32 %v1405, %v1422
    %v1427 = vadd.f32 %v1407, %v1423
    %v1428 = vadd.f32 %v1410, %v1424
    %v1429 = vadd.f32 %v1412, %v1425
    %v1430 = vmul.f32 %v1426, 0.7978846
    %v1431 = vmul.f32 %v1427, 0.7978846
    %v1432 = vmul.f32 %v1428, 0.7978846
    %v1433 = vmul.f32 %v1429, 0.7978846
    %v1434 = vtanh.pop %v1430
    %v1435 = vtanh.pop %v1431
    %v1436 = vtanh.pop %v1432
    %v1437 = vtanh.pop %v1433
    %v1438 = vadd.f32 %v1434, 1.0
    %v1439 = vadd.f32 %v1435, 1.0
    %v1440 = vadd.f32 %v1436, 1.0
    %v1441 = vadd.f32 %v1437, 1.0
    %v1442 = vmul.f32 %v1438, 0.5
    %v1443 = vmul.f32 %v1439, 0.5
    %v1444 = vmul.f32 %v1440, 0.5
    %v1445 = vmul.f32 %v1441, 0.5
    %v1446 = vmul.f32 %v1405, %v1442
    %v1447 = vmul.f32 %v1407, %v1443
    %v1448 = vmul.f32 %v1410, %v1444
    %v1449 = vmul.f32 %v1412, %v1445
    %v1450 = vpack.c.bf16 %v1447, %v1446
    %v1451 = vpack.c.bf16 %v1449, %v1448
    %v1452 = vld [vmem:[%s9] sm:$0xf]
    %v1453 = vld [vmem:[%s9 + $0x4] sm:$0xf]
    %v1454 = vld [vmem:[%s9 + $0x8] sm:$0xf]
    %v1455 = vld [vmem:[%s9 + $0xc] sm:$0xf]
    %v1456 = vld [vmem:[%s9 + $0x10] sm:$0xf]
    %v1457 = vld [vmem:[%s9 + $0x14] sm:$0xf]
    %v1458 = vld [vmem:[%s9 + $0x18] sm:$0xf]
    %v1459 = vld [vmem:[%s9 + $0x1c] sm:$0xf]
    %v1460 = vld [vmem:[%s10] sm:$0x1]
    %v1462 = vperm.slane %v1460, 0
    %v1472 = vunpack.c.l.b16 %v1452
    %v1473 = vunpack.c.l.b16 %v1453
    %v1474 = vunpack.c.l.b16 %v1454
    %v1475 = vunpack.c.l.b16 %v1455
    %v1476 = vunpack.c.l.b16 %v1456
    %v1477 = vunpack.c.l.b16 %v1457
    %v1478 = vunpack.c.l.b16 %v1458
    %v1479 = vunpack.c.l.b16 %v1459
    %v1480 = vpack.c.b16 %v1473, %v1472
    %v1481 = vpack.c.b16 %v1475, %v1474
    %v1482 = vpack.c.b16 %v1477, %v1476
    %v1483 = vpack.c.b16 %v1479, %v1478
    %vm1488 = vcmask 523264
    %v1490 = vsel %vm1488, %v1450, 0
    %v1493 = vsel %vm1488, %v1451, 0
    %1495 = vmatpush.bf16.msra.mxu0 0
    %1496 = vmatpush.bf16.msra.mxu0 0
    %1497 = vmatpush.bf16.msra.mxu0 0
    %1498 = vmatpush.bf16.msra.mxu0 0
    %1499 = vmatpush.bf16.msra.mxu0 %v1483
    %1500 = vmatpush.bf16.msra.mxu0 %v1482
    %1501 = vmatpush.bf16.msra.mxu0 %v1481
    %1502 = vmatpush.bf16.msra.mxu0 %v1480
    %1503 = vmatmul.bf16.gmra.mxu0 %v1490
    %v1504 = vpop.f32.mrf.mxu0
    %v1505 = vadd.f32 %v1462, %v1504
    %v1506 = vpop.f32.mrf.mxu0
    %v1507 = vadd.f32 %v1462, %v1506
    %1508 = vmatmul.bf16.gmra.mxu0 %v1493
    %v1509 = vpop.f32.mrf.mxu0
    %v1510 = vadd.f32 %v1462, %v1509
    %v1511 = vpop.f32.mrf.mxu0
    %v1512 = vadd.f32 %v1462, %v1511
    %1513 = vdwg.mxu0
    %v1514 = vadd.f32 %v1505, %v1363
    %v1515 = vadd.f32 %v1507, %v1364
    %v1516 = vadd.f32 %v1510, %v1365
    %v1517 = vadd.f32 %v1512, %v1366
    %v1518 = vsel %vm104, %v1514, 0.0
    %1519 = vadd.xlane.f32.xlu0 %v1518
    %v1520 = vpop.xlane.xlu0 %1519
    %v1521 = vsel %vm104, %v1515, 0.0
    %1522 = vadd.xlane.f32.xlu0 %v1521
    %v1523 = vpop.xlane.xlu0 %1522
    %v1524 = vsel %vm104, %v1516, 0.0
    %1525 = vadd.xlane.f32.xlu0 %v1524
    %v1526 = vpop.xlane.xlu0 %1525
    %v1527 = vsel %vm104, %v1517, 0.0
    %1528 = vadd.xlane.f32.xlu0 %v1527
    %v1529 = vpop.xlane.xlu0 %1528
    %v1530 = vmul.f32 %v1520, %v1274
    %v1531 = vmul.f32 %v1523, %v1274
    %v1532 = vmul.f32 %v1526, %v1274
    %v1533 = vmul.f32 %v1529, %v1274
    %v1534 = vsub.f32 %v1514, %v1530
    %v1535 = vsub.f32 %v1515, %v1531
    %v1536 = vsub.f32 %v1516, %v1532
    %v1537 = vsub.f32 %v1517, %v1533
    %v1538 = vmul.f32 %v1534, %v1534
    %v1539 = vmul.f32 %v1535, %v1535
    %v1540 = vmul.f32 %v1536, %v1536
    %v1541 = vmul.f32 %v1537, %v1537
    %v1542 = vsel %vm104, %v1538, 0.0
    %1543 = vadd.xlane.f32.xlu0 %v1542
    %v1544 = vpop.xlane.xlu0 %1543
    %v1545 = vsel %vm104, %v1539, 0.0
    %1546 = vadd.xlane.f32.xlu0 %v1545
    %v1547 = vpop.xlane.xlu0 %1546
    %v1548 = vsel %vm104, %v1540, 0.0
    %1549 = vadd.xlane.f32.xlu0 %v1548
    %v1550 = vpop.xlane.xlu0 %1549
    %v1551 = vsel %vm104, %v1541, 0.0
    %1552 = vadd.xlane.f32.xlu0 %v1551
    %v1553 = vpop.xlane.xlu0 %1552
    %v1554 = vmul.f32 %v1544, %v1274
    %v1555 = vmul.f32 %v1547, %v1274
    %v1556 = vmul.f32 %v1550, %v1274
    %v1557 = vmul.f32 %v1553, %v1274
    %v1558 = vadd.f32 %v1554, 1e-05
    %v1559 = vadd.f32 %v1555, 1e-05
    %v1560 = vadd.f32 %v1556, 1e-05
    %v1561 = vadd.f32 %v1557, 1e-05
    %v1562 = vrsqrt.pop %v1558
    %v1563 = vmul.f32 %v1562, %v1558
    %v1564 = vmul.f32 %v1563, %v1562
    %v1565 = vmul.f32 0.5, %v1564
    %v1566 = vsub.f32 1.5, %v1565
    %v1567 = vmul.f32 %v1562, %v1566
    %vm1568 = vweird.f32 %v1558
    %vm1569 = vweird.f32 %v1562
    %vm1570 = vmor %vm1568, %vm1569
    %v1571 = vsel %vm1570, %v1562, %v1567
    %v1572 = vrsqrt.pop %v1559
    %v1573 = vmul.f32 %v1572, %v1559
    %v1574 = vmul.f32 %v1573, %v1572
    %v1575 = vmul.f32 0.5, %v1574
    %v1576 = vsub.f32 1.5, %v1575
    %v1577 = vmul.f32 %v1572, %v1576
    %vm1578 = vweird.f32 %v1559
    %vm1579 = vweird.f32 %v1572
    %vm1580 = vmor %vm1578, %vm1579
    %v1581 = vsel %vm1580, %v1572, %v1577
    %v1582 = vrsqrt.pop %v1560
    %v1583 = vmul.f32 %v1582, %v1560
    %v1584 = vmul.f32 %v1583, %v1582
    %v1585 = vmul.f32 0.5, %v1584
    %v1586 = vsub.f32 1.5, %v1585
    %v1587 = vmul.f32 %v1582, %v1586
    %vm1588 = vweird.f32 %v1560
    %vm1589 = vweird.f32 %v1582
    %vm1590 = vmor %vm1588, %vm1589
    %v1591 = vsel %vm1590, %v1582, %v1587
    %v1592 = vrsqrt.pop %v1561
    %v1593 = vmul.f32 %v1592, %v1561
    %v1594 = vmul.f32 %v1593, %v1592
    %v1595 = vmul.f32 0.5, %v1594
    %v1596 = vsub.f32 1.5, %v1595
    %v1597 = vmul.f32 %v1592, %v1596
    %vm1598 = vweird.f32 %v1561
    %vm1599 = vweird.f32 %v1592
    %vm1600 = vmor %vm1598, %vm1599
    %v1601 = vsel %vm1600, %v1592, %v1597
    %v1602 = vmul.f32 %v1534, %v1571
    %v1603 = vmul.f32 %v1535, %v1581
    %v1604 = vmul.f32 %v1536, %v1591
    %v1605 = vmul.f32 %v1537, %v1601
    %v1606 = vld [vmem:[%s11] sm:$0x1]
    %v1608 = vperm.slane %v1606, 0
    %v1610 = vmul.f32 %v1602, %v1608
    %v1611 = vmul.f32 %v1603, %v1608
    %v1612 = vmul.f32 %v1604, %v1608
    %v1613 = vmul.f32 %v1605, %v1608
    %v1614 = vld [vmem:[%s12] sm:$0x1]
    %v1616 = vperm.slane %v1614, 0
    %v1618 = vadd.f32 %v1610, %v1616
    %v1619 = vadd.f32 %v1611, %v1616
    %v1620 = vadd.f32 %v1612, %v1616
    %v1621 = vadd.f32 %v1613, %v1616
    %1622 = vst.msk [vmem:[#allocation9] sm:$0xff] %vm104, %v1618
    %1623 = vst.msk [vmem:[#allocation9 + $0x8] sm:$0xff] %vm104, %v1619
    %1624 = vst.msk [vmem:[#allocation9 + $0x10] sm:$0xff] %vm104, %v1620
    %1625 = vst.msk [vmem:[#allocation9 + $0x18] sm:$0xff] %vm104, %v1621
    // Predicated region
    $region62: #{tpu_custom_call.1} parent=1 // pred_check
      _
    $region63: #{tpu_custom_call.1} parent=1 // pred_check_branch
      %1627 = sbr.rel (0) target = $region65
    $region64: #{tpu_custom_call.1} parent=1 // pred_region
      %1629 = vsyncadd [#allocation6], 0
      %s1630 = sshll.u32 [#allocation9], 4
      %s1631 = int_to_ptr.vmem [resolvable:$true] %s1630
      %s1632 = sshll.u32 %s13, 4
      %s1633 = int_to_ptr.hbm [resolvable:$true] %s1632
      %1638 = dma.vmem_to_hbm [thread:$0]  %s1631, 512, %s1633, [#allocation6], 128, 128, 8
    $region65: #{tpu_custom_call.1} parent=1 // pred_fallthru
      _
    // Predicated region
    $region66: #{tpu_custom_call.1} parent=1 // pred_check
      _
    $region67: #{tpu_custom_call.1} parent=1 // pred_check_branch
      %1640 = sbr.rel (0) target = $region69
    $region68: #{tpu_custom_call.1} parent=1 // pred_region
      %1642 = dma.done [#allocation6], 512
    $region69: #{tpu_custom_call.1} parent=1 // pred_fallthru
      _
    %1643 = vsyncpa [#allocation5], 1
    %1644 = vsyncpa [#allocation8], 1
    %1645 = vsyncpa [#allocation6], 1

</llo_original>
